<compile_context>
chip_gen: v7x
topology: tpu7x:2x2x1
jax: 0.10.0
libtpu: 0.0.40
codegen_flags: <defaults>
</compile_context>

<pallas_src>
import functools
import math

import numpy as np

import jax
import jax.numpy as jnp
from jax.experimental import pallas as pl
from jax.experimental.pallas import tpu as pltpu


# ----------------------------- small helpers ---------------------------------
def _cdiv(a, b):
    return -(-a // b)


def _round_up(x, m):
    return _cdiv(x, m) * m


def _bucket_layout(causal, num_buckets):
    """(nbk, max_exact) exactly as in the torch code after the causal branch."""
    nbk = num_buckets if causal else num_buckets // 2
    max_exact = nbk // 2
    assert max_exact >= 1, "num_buckets too small for the T5 bucket formula"
    return nbk, max_exact


def _large_bucket_thresholds(nbk, max_exact, max_distance):
    """Integer thresholds for the logarithmic ('large') buckets, computed on the
    host.  For n >= max_exact: bucket = max_exact + #{t in thresholds : n >= t}.
    Removes every transcendental from the runtime path (integer-exact across
    compilers); boundary values of the float formula are fp-ambiguous anyway."""
    c = (nbk - max_exact) / math.log(max_distance / max_exact)

    def large_value(n):
        return max_exact + int(math.log(n / max_exact) * c)  # trunc; arg >= 0

    thresholds = []
    n = max_exact
    for b in range(max_exact + 1, nbk):
        while large_value(n) < b:
            n += 1
        thresholds.append(n)
    return tuple(thresholds)


def _vmem_budget_bytes():
    """~75% of per-core VMEM: ~96 MiB on v5e/v6e (128 MiB), ~48 MiB on v7x (64 MiB)."""
    phys = 64 << 20  # conservative default (v7x per-core VMEM)
    try:
        info = pltpu.get_tpu_info()
        phys = int(getattr(info, "vmem_capacity_bytes", phys)) or phys
    except Exception:
        pass
    return max(32 << 20, (phys * 3) // 4)


# --------------------------- prologue kernel ----------------------------------
def _generator_kernel(emb_ref, g_ref, *, row_offset, causal, nbk, max_exact,
                      thresholds, num_buckets):
    """Builds `bands_per_step` 128x128 blocks of the Toeplitz generator strip:
         G[R, c] = scale * emb[bucket(R - row_offset - c)]
       Every 128x128 block of the (i, j) bias matrix equals one 128-row band of
       G, so all bucket math + the embedding gather is O(i + j) total."""
    step = pl.program_id(0)
    rows = g_ref.shape[0]                                # bands_per_step * 128
    s = jax.lax.broadcasted_iota(jnp.int32, g_ref.shape, 0)
    c = jax.lax.broadcasted_iota(jnp.int32, g_ref.shape, 1)
    n = (step * rows - row_offset) + s - c               # n = q_pos - k_pos

    # T5 bucketization via host-precomputed integer thresholds (no log at runtime).
    if causal:
        off = jnp.zeros_like(n)
        m = jnp.maximum(n, 0)
    else:
        off = (n < 0).astype(jnp.int32) * nbk
        m = jnp.abs(n)
    large = jnp.full_like(m, max_exact)
    for t in thresholds:                                 # nbk - max_exact - 1 compares
        large = large + (m >= t).astype(jnp.int32)
    bucket = off + jnp.where(m < max_exact, m, large)

    # Embedding gather: select chain over the SMEM table (buckets are mutually
    # exclusive); the output scale is already folded into the table.
    # NOTE: cost scales with num_buckets, but the prologue is O(i + j) — tiny
    # next to the O(i*j) expansion.  (A one-hot MXU gather would halve it.)
    vals = jnp.where(bucket == 0, emb_ref[0], jnp.float32(0.0))
    for b in range(1, num_buckets):
        vals = jnp.where(bucket == b, emb_ref[b], vals)
    g_ref[...] = vals.astype(g_ref.dtype)


# ---------------------------- expansion kernel --------------------------------
def _expand_kernel(g_ref, out_ref, *, b_base_off):
    """Pure bandwidth kernel: each 128-wide column block of the (tm, tn) output
    tile is ONE contiguous (tm, 128) copy of the VMEM-resident generator strip
    (consecutive row-bands of a tile are consecutive 128-row blocks of G)."""
    tm, tn = out_ref.shape
    rpb, cpb = tm // 128, tn // 128
    ti = pl.program_id(0)
    tj = pl.program_id(1)
    b0 = b_base_off + ti * rpb - tj * cpb                # band of the tile's (0, 0) block
    for ci in range(cpb):
        start = pl.multiple_of((b0 - ci) * 128, 128)     # guaranteed in [0, g_rows - tm]
        out_ref[:, 128 * ci:128 * (ci + 1)] = g_ref[pl.ds(start, tm), :]


# ------------------------------- wrapper --------------------------------------
def t5_relative_position_bias(
    x,
    emb_weight,                # (num_buckets, 1) — nn.Embedding(num_buckets, 1).weight
    *,
    scale,
    causal=False,
    num_buckets=32,
    max_distance=128,
    block_rows=512,            # output tile rows (rounded up to a multiple of 128)
    block_cols=2048,           # output tile cols (lane-dense stores)
    out_dtype=jnp.float32,     # bf16 halves HBM write traffic if downstream allows
):
    i, j = int(x.shape[-2]), int(x.shape[-1])
    nbk, max_exact = _bucket_layout(causal, num_buckets)
    thresholds = _large_bucket_thresholds(nbk, max_exact, max_distance)

    itemsize = jnp.dtype(out_dtype).itemsize
    budget = _vmem_budget_bytes()

    # Tile sizes: multiples of 128, clamped to the (128-rounded) problem, then
    # shrunk until (strip + double-buffered output tile) fits the VMEM budget.
    tm = min(_round_up(block_rows, 128), _round_up(i, 128))
    tn = min(_round_up(block_cols, 128), _round_up(j, 128))
    while True:
        nit, njt = _cdiv(i, tm), _cdiv(j, tn)
        nbi, nbj = nit * (tm // 128), njt * (tn // 128)  # 128-bands spanned by the tile grid
        nblocks = nbi + nbj - 1
        g_rows = nblocks * 128
        strip_bytes = g_rows * 128 * itemsize
        # Budget 2x strip (auto-pipeline may double-buffer it even with a constant
        # index_map) + double-buffered output tile + slack.
        need = 2 * strip_bytes + 2 * tm * tn * itemsize + (2 << 20)
        if need <= budget or (tm == 128 and tn == 128):
            break
        if tn >= tm and tn > 128:
            tn //= 2
        elif tm > 128:
            tm //= 2
        else:
            break
    # For extremely long sequences the resident strip is O(i + j) and can outgrow
    # VMEM (i + j on the order of ~48K on v7x); that regime needs the banded
    # variant (strip in pl.ANY + manual make_async_copy of the rpb+cpb-1 bands a
    # tile touches).  Not needed for the shapes exercised here.

    # Pre-scaled f32 table (folds the final `bias * scale` into the gather).
    emb_scaled = emb_weight.reshape(num_buckets).astype(jnp.float32) * jnp.float32(scale)

    # --- prologue: Toeplitz generator strip, O(i + j) work --------------------
    bands_per_step = min(8, nblocks)                     # amortize per-grid-step overhead
    rows_per_step = bands_per_step * 128
    gen_kernel = functools.partial(
        _generator_kernel,
        row_offset=128 * (nbj - 1),
        causal=bool(causal),
        nbk=nbk,
        max_exact=max_exact,
        thresholds=thresholds,
        num_buckets=int(num_buckets),
    )
    gflat = pl.pallas_call(
        gen_kernel,
        out_shape=jax.ShapeDtypeStruct((g_rows, 128), out_dtype),
        grid=(_cdiv(nblocks, bands_per_step),),
        in_specs=[pl.BlockSpec(memory_space=pltpu.MemorySpace.SMEM)],
        out_specs=pl.BlockSpec((rows_per_step, 128), lambda b: (b, 0)),
        compiler_params=pltpu.CompilerParams(dimension_semantics=("arbitrary",)),
    )(emb_scaled)

    # --- main kernel: HBM-write-bound Toeplitz expansion, exact (i, j) output --
    expand_kernel = functools.partial(_expand_kernel, b_base_off=nbj - 1)
    vmem_limit = int(min(budget, max(need, 32 << 20)))

    def run_expand(single_buffer_strip):
        if single_buffer_strip:
            # Strip index_map is constant -> one buffer (halves its VMEM footprint).
            strip_spec = pl.BlockSpec((g_rows, 128), lambda a, b: (0, 0),
                                      pipeline_mode=pl.Buffered(1))
        else:
            strip_spec = pl.BlockSpec((g_rows, 128), lambda a, b: (0, 0))
        return pl.pallas_call(
            expand_kernel,
            out_shape=jax.ShapeDtypeStruct((i, j), out_dtype),  # ragged edge tiles masked by Pallas
            grid=(nit, njt),
            in_specs=[strip_spec],
            out_specs=pl.BlockSpec((tm, tn), lambda a, b: (a, b)),
            compiler_params=pltpu.CompilerParams(
                dimension_semantics=("parallel", "parallel"),
                vmem_limit_bytes=vmem_limit,
            ),
        )(gflat)

    try:
        return run_expand(True)
    except Exception:
        # pipeline_mode / Buffered(1) unsupported on this jax version: fall back to
        # the default double-buffered strip (already covered by the VMEM budget).
        return run_expand(False)


# ----------------------- references (for self-checking) -----------------------
def _bucket_int_np(n_qk, causal, num_buckets, max_distance):
    """Threshold-based bucketization (n_qk = q - k) — same math as the kernel."""
    nbk, max_exact = _bucket_layout(causal, num_buckets)
    thresholds = _large_bucket_thresholds(nbk, max_exact, max_distance)
    n = np.asarray(n_qk, np.int64)
    if causal:
        off = np.zeros_like(n)
        m = np.maximum(n, 0)
    else:
        off = (n < 0).astype(np.int64) * nbk
        m = np.abs(n)
    cnt = np.zeros_like(m)
    for t in thresholds:
        cnt = cnt + (m >= t).astype(np.int64)
    return off + np.where(m < max_exact, m, max_exact + cnt)


def _bucket_float_ref_np(relative_position, causal, num_buckets, max_distance):
    """Literal float transliteration of T5RelativePositionBias._relative_position_bucket
    (relative_position = k - q).  Returns (bucket, fp_ambiguous_boundary_mask)."""
    relative_position = np.asarray(relative_position, np.int64)
    ret = np.zeros_like(relative_position)
    n = -relative_position
    if not causal:
        num_buckets //= 2
        ret = ret + (n < 0).astype(np.int64) * num_buckets
        n = np.abs(n)
    else:
        n = np.maximum(n, 0)
    max_exact = num_buckets // 2
    is_small = n < max_exact
    nf = np.maximum(n, 1).astype(np.float64)            # avoid log(0); masked by is_small
    raw = (np.log(nf / max_exact) / math.log(max_distance / max_exact)
           * (num_buckets - max_exact))
    val_if_large = max_exact + np.trunc(raw).astype(np.int64)
    val_if_large = np.minimum(val_if_large, num_buckets - 1)
    ambiguous = (~is_small) & (np.abs(raw - np.rint(raw)) < 1e-9)
    return ret + np.where(is_small, n, val_if_large), ambiguous


def _ref_bias(i, j, emb_weight, scale, causal, num_buckets, max_distance):
    q = np.arange(i, dtype=np.int64)[:, None]
    k = np.arange(j, dtype=np.int64)[None, :]
    bucket = _bucket_int_np(q - k, causal, num_buckets, max_distance)
    table = np.asarray(emb_weight).reshape(num_buckets).astype(np.float32) * np.float32(scale)
    return table[bucket]


if __name__ == "__main__":
    key = jax.random.PRNGKey(0)
    k_x, k_emb = jax.random.split(key)

    # Module hyperparameters (defaults of T5RelativePositionBias).
    scale = 0.125            # e.g. dim_head ** -0.5 for dim_head = 64
    num_buckets = 32
    max_distance = 128

    # Deterministic "Embedding(num_buckets, 1)" weight and NCHW-style input
    # (only the trailing (i, j) dims matter for this module).
    emb_weight = jax.random.normal(k_emb, (num_buckets, 1), dtype=jnp.float32)
    x_small = jax.random.normal(k_x, (2, 4, 16, 16), dtype=jnp.float32)

    # Independent golden check of the host-side bucketization against a literal
    # float transliteration of the torch formula (fp-ambiguous boundary cells,
    # where the float value is an exact integer, are masked).
    for cz in (False, True):
        n = np.arange(-600, 601, dtype=np.int64)         # n = q - k; rel_pos = k - q = -n
        got = _bucket_int_np(n, cz, num_buckets, max_distance)
        want, ambiguous = _bucket_float_ref_np(-n, cz, num_buckets, max_distance)
        assert np.all((got == want) | ambiguous), "bucket thresholds disagree with T5 formula"

    checks = [
        dict(x=x_small, causal=False),                                   # small / masked single tile
        dict(x=jnp.zeros((1, 1, 256, 384), jnp.float32), causal=False),  # multi-band tile
        dict(x=jnp.zeros((1, 1, 200, 264), jnp.float32), causal=True),   # causal + ragged edges
    ]
    for cfg in checks:
        xin = cfg["x"]
        bias = t5_relative_position_bias(
            xin,
            emb_weight,
            scale=scale,
            causal=cfg["causal"],
            num_buckets=num_buckets,
            max_distance=max_distance,
        )
        bias = jax.block_until_ready(bias)
        i, j = int(xin.shape[-2]), int(xin.shape[-1])
        ref = _ref_bias(i, j, emb_weight, scale, cfg["causal"], num_buckets, max_distance)
        assert bias.shape == (i, j)
        assert np.allclose(np.asarray(bias), ref, atol=1e-6, rtol=1e-6), \
            "mismatch vs reference bias"

    print("KERNEL_OK")
</pallas_src>

<mosaic_0001>
module attributes {stable_mosaic.version = 11 : i64} {
  func.func @_generator_kernel(%arg0: i32, %arg1: memref<32xf32, #tpu.memory_space<smem>>, %arg2: memref<128x128xf32, #tpu.memory_space<vmem>>) attributes {dimension_semantics = [#tpu.dimension_semantics<arbitrary>], iteration_bounds = array<i64: 1>, scalar_prefetch = 0 : i64, scratch_operands = 0 : i64, tpu.core_type = #tpu.core_type<tc>, window_params = [{transform_indices = @transform_0, window_bounds = array<i64: 32>}, {transform_indices = @transform_1, window_bounds = array<i64: 128, 128>}]} {
    %0 = tpu.iota {dimensions = array<i32: 0>} : vector<128x128xi32>
    %1 = tpu.iota {dimensions = array<i32: 1>} : vector<128x128xi32>
    %c128_i32 = arith.constant 128 : i32
    %2 = arith.muli %arg0, %c128_i32 : i32
    %c0_i32 = arith.constant 0 : i32
    %3 = arith.subi %2, %c0_i32 : i32
    %4 = vector.broadcast %3 : i32 to vector<128x128xi32>
    %5 = arith.addi %4, %0 : vector<128x128xi32>
    %6 = arith.subi %5, %1 : vector<128x128xi32>
    %c0_i32_0 = arith.constant 0 : i32
    %7 = vector.broadcast %c0_i32_0 : i32 to vector<128x128xi32>
    %8 = arith.cmpi slt, %6, %7 : vector<128x128xi32>
    %9 = arith.extui %8 : vector<128x128xi1> to vector<128x128xi32>
    %c16_i32 = arith.constant 16 : i32
    %10 = vector.broadcast %c16_i32 : i32 to vector<128x128xi32>
    %11 = arith.muli %9, %10 : vector<128x128xi32>
    %12 = math.absi %6 : vector<128x128xi32>
    %c8_i32 = arith.constant 8 : i32
    %13 = vector.broadcast %c8_i32 : i32 to vector<128x128xi32>
    %c12_i32 = arith.constant 12 : i32
    %14 = vector.broadcast %c12_i32 : i32 to vector<128x128xi32>
    %15 = arith.cmpi sge, %12, %14 : vector<128x128xi32>
    %16 = arith.extui %15 : vector<128x128xi1> to vector<128x128xi32>
    %17 = arith.addi %13, %16 : vector<128x128xi32>
    %c16_i32_1 = arith.constant 16 : i32
    %18 = vector.broadcast %c16_i32_1 : i32 to vector<128x128xi32>
    %19 = arith.cmpi sge, %12, %18 : vector<128x128xi32>
    %20 = arith.extui %19 : vector<128x128xi1> to vector<128x128xi32>
    %21 = arith.addi %17, %20 : vector<128x128xi32>
    %c23_i32 = arith.constant 23 : i32
    %22 = vector.broadcast %c23_i32 : i32 to vector<128x128xi32>
    %23 = arith.cmpi sge, %12, %22 : vector<128x128xi32>
    %24 = arith.extui %23 : vector<128x128xi1> to vector<128x128xi32>
    %25 = arith.addi %21, %24 : vector<128x128xi32>
    %c32_i32 = arith.constant 32 : i32
    %26 = vector.broadcast %c32_i32 : i32 to vector<128x128xi32>
    %27 = arith.cmpi sge, %12, %26 : vector<128x128xi32>
    %28 = arith.extui %27 : vector<128x128xi1> to vector<128x128xi32>
    %29 = arith.addi %25, %28 : vector<128x128xi32>
    %c46_i32 = arith.constant 46 : i32
    %30 = vector.broadcast %c46_i32 : i32 to vector<128x128xi32>
    %31 = arith.cmpi sge, %12, %30 : vector<128x128xi32>
    %32 = arith.extui %31 : vector<128x128xi1> to vector<128x128xi32>
    %33 = arith.addi %29, %32 : vector<128x128xi32>
    %c65_i32 = arith.constant 65 : i32
    %34 = vector.broadcast %c65_i32 : i32 to vector<128x128xi32>
    %35 = arith.cmpi sge, %12, %34 : vector<128x128xi32>
    %36 = arith.extui %35 : vector<128x128xi1> to vector<128x128xi32>
    %37 = arith.addi %33, %36 : vector<128x128xi32>
    %c91_i32 = arith.constant 91 : i32
    %38 = vector.broadcast %c91_i32 : i32 to vector<128x128xi32>
    %39 = arith.cmpi sge, %12, %38 : vector<128x128xi32>
    %40 = arith.extui %39 : vector<128x128xi1> to vector<128x128xi32>
    %41 = arith.addi %37, %40 : vector<128x128xi32>
    %c8_i32_2 = arith.constant 8 : i32
    %42 = vector.broadcast %c8_i32_2 : i32 to vector<128x128xi32>
    %43 = arith.cmpi slt, %12, %42 : vector<128x128xi32>
    %44 = arith.select %43, %12, %41 : vector<128x128xi1>, vector<128x128xi32>
    %45 = arith.addi %11, %44 : vector<128x128xi32>
    %c0_i32_3 = arith.constant 0 : i32
    %46 = vector.broadcast %c0_i32_3 : i32 to vector<128x128xi32>
    %47 = arith.cmpi eq, %45, %46 : vector<128x128xi32>
    %c0 = arith.constant 0 : index
    %48 = memref.load %arg1[%c0] : memref<32xf32, #tpu.memory_space<smem>>
    %cst = arith.constant 0.000000e+00 : f32
    %49 = vector.broadcast %48 : f32 to vector<128x128xf32>
    %50 = vector.broadcast %cst : f32 to vector<128x128xf32>
    %51 = arith.select %47, %49, %50 : vector<128x128xi1>, vector<128x128xf32>
    %c1_i32 = arith.constant 1 : i32
    %52 = vector.broadcast %c1_i32 : i32 to vector<128x128xi32>
    %53 = arith.cmpi eq, %45, %52 : vector<128x128xi32>
    %c1 = arith.constant 1 : index
    %54 = memref.load %arg1[%c1] : memref<32xf32, #tpu.memory_space<smem>>
    %55 = vector.broadcast %54 : f32 to vector<128x128xf32>
    %56 = arith.select %53, %55, %51 : vector<128x128xi1>, vector<128x128xf32>
    %c2_i32 = arith.constant 2 : i32
    %57 = vector.broadcast %c2_i32 : i32 to vector<128x128xi32>
    %58 = arith.cmpi eq, %45, %57 : vector<128x128xi32>
    %c2 = arith.constant 2 : index
    %59 = memref.load %arg1[%c2] : memref<32xf32, #tpu.memory_space<smem>>
    %60 = vector.broadcast %59 : f32 to vector<128x128xf32>
    %61 = arith.select %58, %60, %56 : vector<128x128xi1>, vector<128x128xf32>
    %c3_i32 = arith.constant 3 : i32
    %62 = vector.broadcast %c3_i32 : i32 to vector<128x128xi32>
    %63 = arith.cmpi eq, %45, %62 : vector<128x128xi32>
    %c3 = arith.constant 3 : index
    %64 = memref.load %arg1[%c3] : memref<32xf32, #tpu.memory_space<smem>>
    %65 = vector.broadcast %64 : f32 to vector<128x128xf32>
    %66 = arith.select %63, %65, %61 : vector<128x128xi1>, vector<128x128xf32>
    %c4_i32 = arith.constant 4 : i32
    %67 = vector.broadcast %c4_i32 : i32 to vector<128x128xi32>
    %68 = arith.cmpi eq, %45, %67 : vector<128x128xi32>
    %c4 = arith.constant 4 : index
    %69 = memref.load %arg1[%c4] : memref<32xf32, #tpu.memory_space<smem>>
    %70 = vector.broadcast %69 : f32 to vector<128x128xf32>
    %71 = arith.select %68, %70, %66 : vector<128x128xi1>, vector<128x128xf32>
    %c5_i32 = arith.constant 5 : i32
    %72 = vector.broadcast %c5_i32 : i32 to vector<128x128xi32>
    %73 = arith.cmpi eq, %45, %72 : vector<128x128xi32>
    %c5 = arith.constant 5 : index
    %74 = memref.load %arg1[%c5] : memref<32xf32, #tpu.memory_space<smem>>
    %75 = vector.broadcast %74 : f32 to vector<128x128xf32>
    %76 = arith.select %73, %75, %71 : vector<128x128xi1>, vector<128x128xf32>
    %c6_i32 = arith.constant 6 : i32
    %77 = vector.broadcast %c6_i32 : i32 to vector<128x128xi32>
    %78 = arith.cmpi eq, %45, %77 : vector<128x128xi32>
    %c6 = arith.constant 6 : index
    %79 = memref.load %arg1[%c6] : memref<32xf32, #tpu.memory_space<smem>>
    %80 = vector.broadcast %79 : f32 to vector<128x128xf32>
    %81 = arith.select %78, %80, %76 : vector<128x128xi1>, vector<128x128xf32>
    %c7_i32 = arith.constant 7 : i32
    %82 = vector.broadcast %c7_i32 : i32 to vector<128x128xi32>
    %83 = arith.cmpi eq, %45, %82 : vector<128x128xi32>
    %c7 = arith.constant 7 : index
    %84 = memref.load %arg1[%c7] : memref<32xf32, #tpu.memory_space<smem>>
    %85 = vector.broadcast %84 : f32 to vector<128x128xf32>
    %86 = arith.select %83, %85, %81 : vector<128x128xi1>, vector<128x128xf32>
    %c8_i32_4 = arith.constant 8 : i32
    %87 = vector.broadcast %c8_i32_4 : i32 to vector<128x128xi32>
    %88 = arith.cmpi eq, %45, %87 : vector<128x128xi32>
    %c8 = arith.constant 8 : index
    %89 = memref.load %arg1[%c8] : memref<32xf32, #tpu.memory_space<smem>>
    %90 = vector.broadcast %89 : f32 to vector<128x128xf32>
    %91 = arith.select %88, %90, %86 : vector<128x128xi1>, vector<128x128xf32>
    %c9_i32 = arith.constant 9 : i32
    %92 = vector.broadcast %c9_i32 : i32 to vector<128x128xi32>
    %93 = arith.cmpi eq, %45, %92 : vector<128x128xi32>
    %c9 = arith.constant 9 : index
    %94 = memref.load %arg1[%c9] : memref<32xf32, #tpu.memory_space<smem>>
    %95 = vector.broadcast %94 : f32 to vector<128x128xf32>
    %96 = arith.select %93, %95, %91 : vector<128x128xi1>, vector<128x128xf32>
    %c10_i32 = arith.constant 10 : i32
    %97 = vector.broadcast %c10_i32 : i32 to vector<128x128xi32>
    %98 = arith.cmpi eq, %45, %97 : vector<128x128xi32>
    %c10 = arith.constant 10 : index
    %99 = memref.load %arg1[%c10] : memref<32xf32, #tpu.memory_space<smem>>
    %100 = vector.broadcast %99 : f32 to vector<128x128xf32>
    %101 = arith.select %98, %100, %96 : vector<128x128xi1>, vector<128x128xf32>
    %c11_i32 = arith.constant 11 : i32
    %102 = vector.broadcast %c11_i32 : i32 to vector<128x128xi32>
    %103 = arith.cmpi eq, %45, %102 : vector<128x128xi32>
    %c11 = arith.constant 11 : index
    %104 = memref.load %arg1[%c11] : memref<32xf32, #tpu.memory_space<smem>>
    %105 = vector.broadcast %104 : f32 to vector<128x128xf32>
    %106 = arith.select %103, %105, %101 : vector<128x128xi1>, vector<128x128xf32>
    %c12_i32_5 = arith.constant 12 : i32
    %107 = vector.broadcast %c12_i32_5 : i32 to vector<128x128xi32>
    %108 = arith.cmpi eq, %45, %107 : vector<128x128xi32>
    %c12 = arith.constant 12 : index
    %109 = memref.load %arg1[%c12] : memref<32xf32, #tpu.memory_space<smem>>
    %110 = vector.broadcast %109 : f32 to vector<128x128xf32>
    %111 = arith.select %108, %110, %106 : vector<128x128xi1>, vector<128x128xf32>
    %c13_i32 = arith.constant 13 : i32
    %112 = vector.broadcast %c13_i32 : i32 to vector<128x128xi32>
    %113 = arith.cmpi eq, %45, %112 : vector<128x128xi32>
    %c13 = arith.constant 13 : index
    %114 = memref.load %arg1[%c13] : memref<32xf32, #tpu.memory_space<smem>>
    %115 = vector.broadcast %114 : f32 to vector<128x128xf32>
    %116 = arith.select %113, %115, %111 : vector<128x128xi1>, vector<128x128xf32>
    %c14_i32 = arith.constant 14 : i32
    %117 = vector.broadcast %c14_i32 : i32 to vector<128x128xi32>
    %118 = arith.cmpi eq, %45, %117 : vector<128x128xi32>
    %c14 = arith.constant 14 : index
    %119 = memref.load %arg1[%c14] : memref<32xf32, #tpu.memory_space<smem>>
    %120 = vector.broadcast %119 : f32 to vector<128x128xf32>
    %121 = arith.select %118, %120, %116 : vector<128x128xi1>, vector<128x128xf32>
    %c15_i32 = arith.constant 15 : i32
    %122 = vector.broadcast %c15_i32 : i32 to vector<128x128xi32>
    %123 = arith.cmpi eq, %45, %122 : vector<128x128xi32>
    %c15 = arith.constant 15 : index
    %124 = memref.load %arg1[%c15] : memref<32xf32, #tpu.memory_space<smem>>
    %125 = vector.broadcast %124 : f32 to vector<128x128xf32>
    %126 = arith.select %123, %125, %121 : vector<128x128xi1>, vector<128x128xf32>
    %c16_i32_6 = arith.constant 16 : i32
    %127 = vector.broadcast %c16_i32_6 : i32 to vector<128x128xi32>
    %128 = arith.cmpi eq, %45, %127 : vector<128x128xi32>
    %c16 = arith.constant 16 : index
    %129 = memref.load %arg1[%c16] : memref<32xf32, #tpu.memory_space<smem>>
    %130 = vector.broadcast %129 : f32 to vector<128x128xf32>
    %131 = arith.select %128, %130, %126 : vector<128x128xi1>, vector<128x128xf32>
    %c17_i32 = arith.constant 17 : i32
    %132 = vector.broadcast %c17_i32 : i32 to vector<128x128xi32>
    %133 = arith.cmpi eq, %45, %132 : vector<128x128xi32>
    %c17 = arith.constant 17 : index
    %134 = memref.load %arg1[%c17] : memref<32xf32, #tpu.memory_space<smem>>
    %135 = vector.broadcast %134 : f32 to vector<128x128xf32>
    %136 = arith.select %133, %135, %131 : vector<128x128xi1>, vector<128x128xf32>
    %c18_i32 = arith.constant 18 : i32
    %137 = vector.broadcast %c18_i32 : i32 to vector<128x128xi32>
    %138 = arith.cmpi eq, %45, %137 : vector<128x128xi32>
    %c18 = arith.constant 18 : index
    %139 = memref.load %arg1[%c18] : memref<32xf32, #tpu.memory_space<smem>>
    %140 = vector.broadcast %139 : f32 to vector<128x128xf32>
    %141 = arith.select %138, %140, %136 : vector<128x128xi1>, vector<128x128xf32>
    %c19_i32 = arith.constant 19 : i32
    %142 = vector.broadcast %c19_i32 : i32 to vector<128x128xi32>
    %143 = arith.cmpi eq, %45, %142 : vector<128x128xi32>
    %c19 = arith.constant 19 : index
    %144 = memref.load %arg1[%c19] : memref<32xf32, #tpu.memory_space<smem>>
    %145 = vector.broadcast %144 : f32 to vector<128x128xf32>
    %146 = arith.select %143, %145, %141 : vector<128x128xi1>, vector<128x128xf32>
    %c20_i32 = arith.constant 20 : i32
    %147 = vector.broadcast %c20_i32 : i32 to vector<128x128xi32>
    %148 = arith.cmpi eq, %45, %147 : vector<128x128xi32>
    %c20 = arith.constant 20 : index
    %149 = memref.load %arg1[%c20] : memref<32xf32, #tpu.memory_space<smem>>
    %150 = vector.broadcast %149 : f32 to vector<128x128xf32>
    %151 = arith.select %148, %150, %146 : vector<128x128xi1>, vector<128x128xf32>
    %c21_i32 = arith.constant 21 : i32
    %152 = vector.broadcast %c21_i32 : i32 to vector<128x128xi32>
    %153 = arith.cmpi eq, %45, %152 : vector<128x128xi32>
    %c21 = arith.constant 21 : index
    %154 = memref.load %arg1[%c21] : memref<32xf32, #tpu.memory_space<smem>>
    %155 = vector.broadcast %154 : f32 to vector<128x128xf32>
    %156 = arith.select %153, %155, %151 : vector<128x128xi1>, vector<128x128xf32>
    %c22_i32 = arith.constant 22 : i32
    %157 = vector.broadcast %c22_i32 : i32 to vector<128x128xi32>
    %158 = arith.cmpi eq, %45, %157 : vector<128x128xi32>
    %c22 = arith.constant 22 : index
    %159 = memref.load %arg1[%c22] : memref<32xf32, #tpu.memory_space<smem>>
    %160 = vector.broadcast %159 : f32 to vector<128x128xf32>
    %161 = arith.select %158, %160, %156 : vector<128x128xi1>, vector<128x128xf32>
    %c23_i32_7 = arith.constant 23 : i32
    %162 = vector.broadcast %c23_i32_7 : i32 to vector<128x128xi32>
    %163 = arith.cmpi eq, %45, %162 : vector<128x128xi32>
    %c23 = arith.constant 23 : index
    %164 = memref.load %arg1[%c23] : memref<32xf32, #tpu.memory_space<smem>>
    %165 = vector.broadcast %164 : f32 to vector<128x128xf32>
    %166 = arith.select %163, %165, %161 : vector<128x128xi1>, vector<128x128xf32>
    %c24_i32 = arith.constant 24 : i32
    %167 = vector.broadcast %c24_i32 : i32 to vector<128x128xi32>
    %168 = arith.cmpi eq, %45, %167 : vector<128x128xi32>
    %c24 = arith.constant 24 : index
    %169 = memref.load %arg1[%c24] : memref<32xf32, #tpu.memory_space<smem>>
    %170 = vector.broadcast %169 : f32 to vector<128x128xf32>
    %171 = arith.select %168, %170, %166 : vector<128x128xi1>, vector<128x128xf32>
    %c25_i32 = arith.constant 25 : i32
    %172 = vector.broadcast %c25_i32 : i32 to vector<128x128xi32>
    %173 = arith.cmpi eq, %45, %172 : vector<128x128xi32>
    %c25 = arith.constant 25 : index
    %174 = memref.load %arg1[%c25] : memref<32xf32, #tpu.memory_space<smem>>
    %175 = vector.broadcast %174 : f32 to vector<128x128xf32>
    %176 = arith.select %173, %175, %171 : vector<128x128xi1>, vector<128x128xf32>
    %c26_i32 = arith.constant 26 : i32
    %177 = vector.broadcast %c26_i32 : i32 to vector<128x128xi32>
    %178 = arith.cmpi eq, %45, %177 : vector<128x128xi32>
    %c26 = arith.constant 26 : index
    %179 = memref.load %arg1[%c26] : memref<32xf32, #tpu.memory_space<smem>>
    %180 = vector.broadcast %179 : f32 to vector<128x128xf32>
    %181 = arith.select %178, %180, %176 : vector<128x128xi1>, vector<128x128xf32>
    %c27_i32 = arith.constant 27 : i32
    %182 = vector.broadcast %c27_i32 : i32 to vector<128x128xi32>
    %183 = arith.cmpi eq, %45, %182 : vector<128x128xi32>
    %c27 = arith.constant 27 : index
    %184 = memref.load %arg1[%c27] : memref<32xf32, #tpu.memory_space<smem>>
    %185 = vector.broadcast %184 : f32 to vector<128x128xf32>
    %186 = arith.select %183, %185, %181 : vector<128x128xi1>, vector<128x128xf32>
    %c28_i32 = arith.constant 28 : i32
    %187 = vector.broadcast %c28_i32 : i32 to vector<128x128xi32>
    %188 = arith.cmpi eq, %45, %187 : vector<128x128xi32>
    %c28 = arith.constant 28 : index
    %189 = memref.load %arg1[%c28] : memref<32xf32, #tpu.memory_space<smem>>
    %190 = vector.broadcast %189 : f32 to vector<128x128xf32>
    %191 = arith.select %188, %190, %186 : vector<128x128xi1>, vector<128x128xf32>
    %c29_i32 = arith.constant 29 : i32
    %192 = vector.broadcast %c29_i32 : i32 to vector<128x128xi32>
    %193 = arith.cmpi eq, %45, %192 : vector<128x128xi32>
    %c29 = arith.constant 29 : index
    %194 = memref.load %arg1[%c29] : memref<32xf32, #tpu.memory_space<smem>>
    %195 = vector.broadcast %194 : f32 to vector<128x128xf32>
    %196 = arith.select %193, %195, %191 : vector<128x128xi1>, vector<128x128xf32>
    %c30_i32 = arith.constant 30 : i32
    %197 = vector.broadcast %c30_i32 : i32 to vector<128x128xi32>
    %198 = arith.cmpi eq, %45, %197 : vector<128x128xi32>
    %c30 = arith.constant 30 : index
    %199 = memref.load %arg1[%c30] : memref<32xf32, #tpu.memory_space<smem>>
    %200 = vector.broadcast %199 : f32 to vector<128x128xf32>
    %201 = arith.select %198, %200, %196 : vector<128x128xi1>, vector<128x128xf32>
    %c31_i32 = arith.constant 31 : i32
    %202 = vector.broadcast %c31_i32 : i32 to vector<128x128xi32>
    %203 = arith.cmpi eq, %45, %202 : vector<128x128xi32>
    %c31 = arith.constant 31 : index
    %204 = memref.load %arg1[%c31] : memref<32xf32, #tpu.memory_space<smem>>
    %205 = vector.broadcast %204 : f32 to vector<128x128xf32>
    %206 = arith.select %203, %205, %201 : vector<128x128xi1>, vector<128x128xf32>
    %c0_8 = arith.constant 0 : index
    %c0_9 = arith.constant 0 : index
    %207 = vector.load %arg2[%c0_8, %c0_9] : memref<128x128xf32, #tpu.memory_space<vmem>>, vector<128x128xf32>
    tpu.vector_store %arg2[%c0_8, %c0_9], %206 {strides = array<i32>} : memref<128x128xf32, #tpu.memory_space<vmem>>, vector<128x128xf32>,
    return
  }
  func.func @transform_0(%arg0: i32) -> i32 {
    %c0_i32 = arith.constant 0 : i32
    %c0_i32_0 = arith.constant 0 : i32
    return %c0_i32 : i32
  }
  func.func @transform_1(%arg0: i32) -> (i32, i32) {
    %c0_i32 = arith.constant 0 : i32
    %c0_i32_0 = arith.constant 0 : i32
    return %arg0, %c0_i32 : i32, i32
  }
}

</mosaic_0001>

<llo_original>
// kernel: tpu_custom_call.1
$region0: #{tpu_custom_call.1}
  #allocation0 [shape = 'u32[]', space=smem, size = 0x4, offset = 0x4, fixed_abs, tag = 'smem constant byte address 0x4 - core index']
  #allocation1 [shape = 'u32[144,128]{1,0:T(1,128)}', space=vmem, size = 0x12000, scoped, tag = 'internal scratch']
  %s0 = inlined_call_operand.hbm [shape: f32[32], index: 0, kind: input, shape index: {}]
  %s1 = inlined_call_operand.hbm [shape: f32[128,128], index: 1, kind: output, shape index: {}]
  %s2 = sld [smem:[#allocation0]]
  $region18: #{tpu_custom_call.1} parent=0
    _
  %s4 = ssub.s32 1, %s2
  %s5 = scalar_select 0, %s4, %s2
  $region1: #{tpu_custom_call.1} parent=0
    #allocation2 [shape = 'u8[512]{0}', space=smem, size = 0x200, scoped, tag = 'input window, operand 0, single buffered']
    #allocation3 [shape = 's32[1]{0}', space=sflag, size = 0x4, scoped, tag = 'scoped memory for tpu_custom_call.1']
    #allocation4 [shape = 's32[1]{0}', space=sflag, size = 0x4, scoped, tag = 'scoped memory for tpu_custom_call.1']
    #allocation5 [shape = 'u8[65536]{0}', space=vmem, size = 0x10000, scoped, tag = 'output window, operand 0, single buffered']
    %6 = vsyncpa [#allocation4], 0
    %7 = vsyncpa [#allocation3], 0
    // Predicated region
    $region2: #{tpu_custom_call.1} parent=1 // pred_check
      _
    $region3: #{tpu_custom_call.1} parent=1 // pred_check_branch
      %9 = sbr.rel (0) target = $region5
    $region4: #{tpu_custom_call.1} parent=1 // pred_region
      %s11 = ssub.s32 16, 16
      %12 = vsyncadd [#allocation4], %s11
      %15 = dma.hbm_to_smem %s0, 16, [#allocation2], [#allocation4]
    $region5: #{tpu_custom_call.1} parent=1 // pred_fallthru
      _
    // Predicated region
    $region6: #{tpu_custom_call.1} parent=1 // pred_check
      _
    $region7: #{tpu_custom_call.1} parent=1 // pred_check_branch
      %17 = sbr.rel (0) target = $region9
    $region8: #{tpu_custom_call.1} parent=1 // pred_region
      %18 = dma.done [#allocation4], 16
    $region9: #{tpu_custom_call.1} parent=1 // pred_fallthru
      _
    %19 = sfence
    %v20 = vlaneseq
    %v21 = vshrl.u32 %v20, 7
    %v22 = vadd.s32 %v21, 8
    %v23 = vadd.s32 %v21, 16
    %v24 = vadd.s32 %v21, 24
    %v25 = vadd.s32 %v21, 32
    %v26 = vadd.s32 %v21, 40
    %v27 = vadd.s32 %v21, 48
    %v28 = vadd.s32 %v21, 56
    %v29 = vadd.s32 %v21, 64
    %v30 = vadd.s32 %v21, 72
    %v31 = vadd.s32 %v21, 80
    %v32 = vadd.s32 %v21, 88
    %v33 = vadd.s32 %v21, 96
    %v34 = vadd.s32 %v21, 104
    %v35 = vadd.s32 %v21, 112
    %v36 = vadd.s32 %v21, 120
    %v37 = vlaneseq
    %v38 = vand.u32 %v37, 127
    %s39 = smul.u32 0, 128
    %v40 = vstv %s39
    %v41 = vadd.s32 %v40, %v21
    %v42 = vadd.s32 %v40, %v22
    %v43 = vadd.s32 %v40, %v23
    %v44 = vadd.s32 %v40, %v24
    %v45 = vadd.s32 %v40, %v25
    %v46 = vadd.s32 %v40, %v26
    %v47 = vadd.s32 %v40, %v27
    %v48 = vadd.s32 %v40, %v28
    %v49 = vadd.s32 %v40, %v29
    %v50 = vadd.s32 %v40, %v30
    %v51 = vadd.s32 %v40, %v31
    %v52 = vadd.s32 %v40, %v32
    %v53 = vadd.s32 %v40, %v33
    %v54 = vadd.s32 %v40, %v34
    %v55 = vadd.s32 %v40, %v35
    %v56 = vadd.s32 %v40, %v36
    %v57 = vsub.s32 %v41, %v38
    %v58 = vsub.s32 %v42, %v38
    %v59 = vsub.s32 %v43, %v38
    %v60 = vsub.s32 %v44, %v38
    %v61 = vsub.s32 %v45, %v38
    %v62 = vsub.s32 %v46, %v38
    %v63 = vsub.s32 %v47, %v38
    %v64 = vsub.s32 %v48, %v38
    %v65 = vsub.s32 %v49, %v38
    %v66 = vsub.s32 %v50, %v38
    %v67 = vsub.s32 %v51, %v38
    %v68 = vsub.s32 %v52, %v38
    %v69 = vsub.s32 %v53, %v38
    %v70 = vsub.s32 %v54, %v38
    %v71 = vsub.s32 %v55, %v38
    %v72 = vsub.s32 %v56, %v38
    %vm73 = vcmp.lt.s32.totalorder %v57, 0
    %vm74 = vcmp.lt.s32.totalorder %v58, 0
    %vm75 = vcmp.lt.s32.totalorder %v59, 0
    %vm76 = vcmp.lt.s32.totalorder %v60, 0
    %vm77 = vcmp.lt.s32.totalorder %v61, 0
    %vm78 = vcmp.lt.s32.totalorder %v62, 0
    %vm79 = vcmp.lt.s32.totalorder %v63, 0
    %vm80 = vcmp.lt.s32.totalorder %v64, 0
    %vm81 = vcmp.lt.s32.totalorder %v65, 0
    %vm82 = vcmp.lt.s32.totalorder %v66, 0
    %vm83 = vcmp.lt.s32.totalorder %v67, 0
    %vm84 = vcmp.lt.s32.totalorder %v68, 0
    %vm85 = vcmp.lt.s32.totalorder %v69, 0
    %vm86 = vcmp.lt.s32.totalorder %v70, 0
    %vm87 = vcmp.lt.s32.totalorder %v71, 0
    %vm88 = vcmp.lt.s32.totalorder %v72, 0
    %v89 = vsel %vm73, 1, 0
    %v90 = vsel %vm74, 1, 0
    %v91 = vsel %vm75, 1, 0
    %v92 = vsel %vm76, 1, 0
    %v93 = vsel %vm77, 1, 0
    %v94 = vsel %vm78, 1, 0
    %v95 = vsel %vm79, 1, 0
    %v96 = vsel %vm80, 1, 0
    %v97 = vsel %vm81, 1, 0
    %v98 = vsel %vm82, 1, 0
    %v99 = vsel %vm83, 1, 0
    %v100 = vsel %vm84, 1, 0
    %v101 = vsel %vm85, 1, 0
    %v102 = vsel %vm86, 1, 0
    %v103 = vsel %vm87, 1, 0
    %v104 = vsel %vm88, 1, 0
    %v105 = vmul.u32 %v89, 16
    %v106 = vmul.u32 %v90, 16
    %v107 = vmul.u32 %v91, 16
    %v108 = vmul.u32 %v92, 16
    %v109 = vmul.u32 %v93, 16
    %v110 = vmul.u32 %v94, 16
    %v111 = vmul.u32 %v95, 16
    %v112 = vmul.u32 %v96, 16
    %v113 = vmul.u32 %v97, 16
    %v114 = vmul.u32 %v98, 16
    %v115 = vmul.u32 %v99, 16
    %v116 = vmul.u32 %v100, 16
    %v117 = vmul.u32 %v101, 16
    %v118 = vmul.u32 %v102, 16
    %v119 = vmul.u32 %v103, 16
    %v120 = vmul.u32 %v104, 16
    %v121 = vsub.s32 0, %v57
    %v122 = vsel %vm73, %v121, %v57
    %v123 = vsub.s32 0, %v58
    %v124 = vsel %vm74, %v123, %v58
    %v125 = vsub.s32 0, %v59
    %v126 = vsel %vm75, %v125, %v59
    %v127 = vsub.s32 0, %v60
    %v128 = vsel %vm76, %v127, %v60
    %v129 = vsub.s32 0, %v61
    %v130 = vsel %vm77, %v129, %v61
    %v131 = vsub.s32 0, %v62
    %v132 = vsel %vm78, %v131, %v62
    %v133 = vsub.s32 0, %v63
    %v134 = vsel %vm79, %v133, %v63
    %v135 = vsub.s32 0, %v64
    %v136 = vsel %vm80, %v135, %v64
    %v137 = vsub.s32 0, %v65
    %v138 = vsel %vm81, %v137, %v65
    %v139 = vsub.s32 0, %v66
    %v140 = vsel %vm82, %v139, %v66
    %v141 = vsub.s32 0, %v67
    %v142 = vsel %vm83, %v141, %v67
    %v143 = vsub.s32 0, %v68
    %v144 = vsel %vm84, %v143, %v68
    %v145 = vsub.s32 0, %v69
    %v146 = vsel %vm85, %v145, %v69
    %v147 = vsub.s32 0, %v70
    %v148 = vsel %vm86, %v147, %v70
    %v149 = vsub.s32 0, %v71
    %v150 = vsel %vm87, %v149, %v71
    %v151 = vsub.s32 0, %v72
    %v152 = vsel %vm88, %v151, %v72
    %vm153 = vcmp.ge.s32.totalorder %v122, 12
    %vm154 = vcmp.ge.s32.totalorder %v124, 12
    %vm155 = vcmp.ge.s32.totalorder %v126, 12
    %vm156 = vcmp.ge.s32.totalorder %v128, 12
    %vm157 = vcmp.ge.s32.totalorder %v130, 12
    %vm158 = vcmp.ge.s32.totalorder %v132, 12
    %vm159 = vcmp.ge.s32.totalorder %v134, 12
    %vm160 = vcmp.ge.s32.totalorder %v136, 12
    %vm161 = vcmp.ge.s32.totalorder %v138, 12
    %vm162 = vcmp.ge.s32.totalorder %v140, 12
    %vm163 = vcmp.ge.s32.totalorder %v142, 12
    %vm164 = vcmp.ge.s32.totalorder %v144, 12
    %vm165 = vcmp.ge.s32.totalorder %v146, 12
    %vm166 = vcmp.ge.s32.totalorder %v148, 12
    %vm167 = vcmp.ge.s32.totalorder %v150, 12
    %vm168 = vcmp.ge.s32.totalorder %v152, 12
    %v169 = vsel %vm153, 1, 0
    %v170 = vsel %vm154, 1, 0
    %v171 = vsel %vm155, 1, 0
    %v172 = vsel %vm156, 1, 0
    %v173 = vsel %vm157, 1, 0
    %v174 = vsel %vm158, 1, 0
    %v175 = vsel %vm159, 1, 0
    %v176 = vsel %vm160, 1, 0
    %v177 = vsel %vm161, 1, 0
    %v178 = vsel %vm162, 1, 0
    %v179 = vsel %vm163, 1, 0
    %v180 = vsel %vm164, 1, 0
    %v181 = vsel %vm165, 1, 0
    %v182 = vsel %vm166, 1, 0
    %v183 = vsel %vm167, 1, 0
    %v184 = vsel %vm168, 1, 0
    %v185 = vadd.s32 %v169, 8
    %v186 = vadd.s32 %v170, 8
    %v187 = vadd.s32 %v171, 8
    %v188 = vadd.s32 %v172, 8
    %v189 = vadd.s32 %v173, 8
    %v190 = vadd.s32 %v174, 8
    %v191 = vadd.s32 %v175, 8
    %v192 = vadd.s32 %v176, 8
    %v193 = vadd.s32 %v177, 8
    %v194 = vadd.s32 %v178, 8
    %v195 = vadd.s32 %v179, 8
    %v196 = vadd.s32 %v180, 8
    %v197 = vadd.s32 %v181, 8
    %v198 = vadd.s32 %v182, 8
    %v199 = vadd.s32 %v183, 8
    %v200 = vadd.s32 %v184, 8
    %vm201 = vcmp.ge.s32.totalorder %v122, 16
    %vm202 = vcmp.ge.s32.totalorder %v124, 16
    %vm203 = vcmp.ge.s32.totalorder %v126, 16
    %vm204 = vcmp.ge.s32.totalorder %v128, 16
    %vm205 = vcmp.ge.s32.totalorder %v130, 16
    %vm206 = vcmp.ge.s32.totalorder %v132, 16
    %vm207 = vcmp.ge.s32.totalorder %v134, 16
    %vm208 = vcmp.ge.s32.totalorder %v136, 16
    %vm209 = vcmp.ge.s32.totalorder %v138, 16
    %vm210 = vcmp.ge.s32.totalorder %v140, 16
    %vm211 = vcmp.ge.s32.totalorder %v142, 16
    %vm212 = vcmp.ge.s32.totalorder %v144, 16
    %vm213 = vcmp.ge.s32.totalorder %v146, 16
    %vm214 = vcmp.ge.s32.totalorder %v148, 16
    %vm215 = vcmp.ge.s32.totalorder %v150, 16
    %vm216 = vcmp.ge.s32.totalorder %v152, 16
    %v217 = vsel %vm201, 1, 0
    %v218 = vsel %vm202, 1, 0
    %v219 = vsel %vm203, 1, 0
    %v220 = vsel %vm204, 1, 0
    %v221 = vsel %vm205, 1, 0
    %v222 = vsel %vm206, 1, 0
    %v223 = vsel %vm207, 1, 0
    %v224 = vsel %vm208, 1, 0
    %v225 = vsel %vm209, 1, 0
    %v226 = vsel %vm210, 1, 0
    %v227 = vsel %vm211, 1, 0
    %v228 = vsel %vm212, 1, 0
    %v229 = vsel %vm213, 1, 0
    %v230 = vsel %vm214, 1, 0
    %v231 = vsel %vm215, 1, 0
    %v232 = vsel %vm216, 1, 0
    %v233 = vadd.s32 %v185, %v217
    %v234 = vadd.s32 %v186, %v218
    %v235 = vadd.s32 %v187, %v219
    %v236 = vadd.s32 %v188, %v220
    %v237 = vadd.s32 %v189, %v221
    %v238 = vadd.s32 %v190, %v222
    %v239 = vadd.s32 %v191, %v223
    %v240 = vadd.s32 %v192, %v224
    %v241 = vadd.s32 %v193, %v225
    %v242 = vadd.s32 %v194, %v226
    %v243 = vadd.s32 %v195, %v227
    %v244 = vadd.s32 %v196, %v228
    %v245 = vadd.s32 %v197, %v229
    %v246 = vadd.s32 %v198, %v230
    %v247 = vadd.s32 %v199, %v231
    %v248 = vadd.s32 %v200, %v232
    %vm249 = vcmp.ge.s32.totalorder %v122, 23
    %vm250 = vcmp.ge.s32.totalorder %v124, 23
    %vm251 = vcmp.ge.s32.totalorder %v126, 23
    %vm252 = vcmp.ge.s32.totalorder %v128, 23
    %vm253 = vcmp.ge.s32.totalorder %v130, 23
    %vm254 = vcmp.ge.s32.totalorder %v132, 23
    %vm255 = vcmp.ge.s32.totalorder %v134, 23
    %vm256 = vcmp.ge.s32.totalorder %v136, 23
    %vm257 = vcmp.ge.s32.totalorder %v138, 23
    %vm258 = vcmp.ge.s32.totalorder %v140, 23
    %vm259 = vcmp.ge.s32.totalorder %v142, 23
    %vm260 = vcmp.ge.s32.totalorder %v144, 23
    %vm261 = vcmp.ge.s32.totalorder %v146, 23
    %vm262 = vcmp.ge.s32.totalorder %v148, 23
    %vm263 = vcmp.ge.s32.totalorder %v150, 23
    %vm264 = vcmp.ge.s32.totalorder %v152, 23
    %v265 = vsel %vm249, 1, 0
    %v266 = vsel %vm250, 1, 0
    %v267 = vsel %vm251, 1, 0
    %v268 = vsel %vm252, 1, 0
    %v269 = vsel %vm253, 1, 0
    %v270 = vsel %vm254, 1, 0
    %v271 = vsel %vm255, 1, 0
    %v272 = vsel %vm256, 1, 0
    %v273 = vsel %vm257, 1, 0
    %v274 = vsel %vm258, 1, 0
    %v275 = vsel %vm259, 1, 0
    %v276 = vsel %vm260, 1, 0
    %v277 = vsel %vm261, 1, 0
    %v278 = vsel %vm262, 1, 0
    %v279 = vsel %vm263, 1, 0
    %v280 = vsel %vm264, 1, 0
    %v281 = vadd.s32 %v233, %v265
    %v282 = vadd.s32 %v234, %v266
    %v283 = vadd.s32 %v235, %v267
    %v284 = vadd.s32 %v236, %v268
    %v285 = vadd.s32 %v237, %v269
    %v286 = vadd.s32 %v238, %v270
    %v287 = vadd.s32 %v239, %v271
    %v288 = vadd.s32 %v240, %v272
    %v289 = vadd.s32 %v241, %v273
    %v290 = vadd.s32 %v242, %v274
    %v291 = vadd.s32 %v243, %v275
    %v292 = vadd.s32 %v244, %v276
    %v293 = vadd.s32 %v245, %v277
    %v294 = vadd.s32 %v246, %v278
    %v295 = vadd.s32 %v247, %v279
    %v296 = vadd.s32 %v248, %v280
    %vm297 = vcmp.ge.s32.totalorder %v122, 32
    %vm298 = vcmp.ge.s32.totalorder %v124, 32
    %vm299 = vcmp.ge.s32.totalorder %v126, 32
    %vm300 = vcmp.ge.s32.totalorder %v128, 32
    %vm301 = vcmp.ge.s32.totalorder %v130, 32
    %vm302 = vcmp.ge.s32.totalorder %v132, 32
    %vm303 = vcmp.ge.s32.totalorder %v134, 32
    %vm304 = vcmp.ge.s32.totalorder %v136, 32
    %vm305 = vcmp.ge.s32.totalorder %v138, 32
    %vm306 = vcmp.ge.s32.totalorder %v140, 32
    %vm307 = vcmp.ge.s32.totalorder %v142, 32
    %vm308 = vcmp.ge.s32.totalorder %v144, 32
    %vm309 = vcmp.ge.s32.totalorder %v146, 32
    %vm310 = vcmp.ge.s32.totalorder %v148, 32
    %vm311 = vcmp.ge.s32.totalorder %v150, 32
    %vm312 = vcmp.ge.s32.totalorder %v152, 32
    %v313 = vsel %vm297, 1, 0
    %v314 = vsel %vm298, 1, 0
    %v315 = vsel %vm299, 1, 0
    %v316 = vsel %vm300, 1, 0
    %v317 = vsel %vm301, 1, 0
    %v318 = vsel %vm302, 1, 0
    %v319 = vsel %vm303, 1, 0
    %v320 = vsel %vm304, 1, 0
    %v321 = vsel %vm305, 1, 0
    %v322 = vsel %vm306, 1, 0
    %v323 = vsel %vm307, 1, 0
    %v324 = vsel %vm308, 1, 0
    %v325 = vsel %vm309, 1, 0
    %v326 = vsel %vm310, 1, 0
    %v327 = vsel %vm311, 1, 0
    %v328 = vsel %vm312, 1, 0
    %v329 = vadd.s32 %v281, %v313
    %v330 = vadd.s32 %v282, %v314
    %v331 = vadd.s32 %v283, %v315
    %v332 = vadd.s32 %v284, %v316
    %v333 = vadd.s32 %v285, %v317
    %v334 = vadd.s32 %v286, %v318
    %v335 = vadd.s32 %v287, %v319
    %v336 = vadd.s32 %v288, %v320
    %v337 = vadd.s32 %v289, %v321
    %v338 = vadd.s32 %v290, %v322
    %v339 = vadd.s32 %v291, %v323
    %v340 = vadd.s32 %v292, %v324
    %v341 = vadd.s32 %v293, %v325
    %v342 = vadd.s32 %v294, %v326
    %v343 = vadd.s32 %v295, %v327
    %v344 = vadd.s32 %v296, %v328
    %vm345 = vcmp.ge.s32.totalorder %v122, 46
    %vm346 = vcmp.ge.s32.totalorder %v124, 46
    %vm347 = vcmp.ge.s32.totalorder %v126, 46
    %vm348 = vcmp.ge.s32.totalorder %v128, 46
    %vm349 = vcmp.ge.s32.totalorder %v130, 46
    %vm350 = vcmp.ge.s32.totalorder %v132, 46
    %vm351 = vcmp.ge.s32.totalorder %v134, 46
    %vm352 = vcmp.ge.s32.totalorder %v136, 46
    %vm353 = vcmp.ge.s32.totalorder %v138, 46
    %vm354 = vcmp.ge.s32.totalorder %v140, 46
    %vm355 = vcmp.ge.s32.totalorder %v142, 46
    %vm356 = vcmp.ge.s32.totalorder %v144, 46
    %vm357 = vcmp.ge.s32.totalorder %v146, 46
    %vm358 = vcmp.ge.s32.totalorder %v148, 46
    %vm359 = vcmp.ge.s32.totalorder %v150, 46
    %vm360 = vcmp.ge.s32.totalorder %v152, 46
    %v361 = vsel %vm345, 1, 0
    %v362 = vsel %vm346, 1, 0
    %v363 = vsel %vm347, 1, 0
    %v364 = vsel %vm348, 1, 0
    %v365 = vsel %vm349, 1, 0
    %v366 = vsel %vm350, 1, 0
    %v367 = vsel %vm351, 1, 0
    %v368 = vsel %vm352, 1, 0
    %v369 = vsel %vm353, 1, 0
    %v370 = vsel %vm354, 1, 0
    %v371 = vsel %vm355, 1, 0
    %v372 = vsel %vm356, 1, 0
    %v373 = vsel %vm357, 1, 0
    %v374 = vsel %vm358, 1, 0
    %v375 = vsel %vm359, 1, 0
    %v376 = vsel %vm360, 1, 0
    %v377 = vadd.s32 %v329, %v361
    %v378 = vadd.s32 %v330, %v362
    %v379 = vadd.s32 %v331, %v363
    %v380 = vadd.s32 %v332, %v364
    %v381 = vadd.s32 %v333, %v365
    %v382 = vadd.s32 %v334, %v366
    %v383 = vadd.s32 %v335, %v367
    %v384 = vadd.s32 %v336, %v368
    %v385 = vadd.s32 %v337, %v369
    %v386 = vadd.s32 %v338, %v370
    %v387 = vadd.s32 %v339, %v371
    %v388 = vadd.s32 %v340, %v372
    %v389 = vadd.s32 %v341, %v373
    %v390 = vadd.s32 %v342, %v374
    %v391 = vadd.s32 %v343, %v375
    %v392 = vadd.s32 %v344, %v376
    %vm393 = vcmp.ge.s32.totalorder %v122, 65
    %vm394 = vcmp.ge.s32.totalorder %v124, 65
    %vm395 = vcmp.ge.s32.totalorder %v126, 65
    %vm396 = vcmp.ge.s32.totalorder %v128, 65
    %vm397 = vcmp.ge.s32.totalorder %v130, 65
    %vm398 = vcmp.ge.s32.totalorder %v132, 65
    %vm399 = vcmp.ge.s32.totalorder %v134, 65
    %vm400 = vcmp.ge.s32.totalorder %v136, 65
    %vm401 = vcmp.ge.s32.totalorder %v138, 65
    %vm402 = vcmp.ge.s32.totalorder %v140, 65
    %vm403 = vcmp.ge.s32.totalorder %v142, 65
    %vm404 = vcmp.ge.s32.totalorder %v144, 65
    %vm405 = vcmp.ge.s32.totalorder %v146, 65
    %vm406 = vcmp.ge.s32.totalorder %v148, 65
    %vm407 = vcmp.ge.s32.totalorder %v150, 65
    %vm408 = vcmp.ge.s32.totalorder %v152, 65
    %v409 = vsel %vm393, 1, 0
    %v410 = vsel %vm394, 1, 0
    %v411 = vsel %vm395, 1, 0
    %v412 = vsel %vm396, 1, 0
    %v413 = vsel %vm397, 1, 0
    %v414 = vsel %vm398, 1, 0
    %v415 = vsel %vm399, 1, 0
    %v416 = vsel %vm400, 1, 0
    %v417 = vsel %vm401, 1, 0
    %v418 = vsel %vm402, 1, 0
    %v419 = vsel %vm403, 1, 0
    %v420 = vsel %vm404, 1, 0
    %v421 = vsel %vm405, 1, 0
    %v422 = vsel %vm406, 1, 0
    %v423 = vsel %vm407, 1, 0
    %v424 = vsel %vm408, 1, 0
    %v425 = vadd.s32 %v377, %v409
    %v426 = vadd.s32 %v378, %v410
    %v427 = vadd.s32 %v379, %v411
    %v428 = vadd.s32 %v380, %v412
    %v429 = vadd.s32 %v381, %v413
    %v430 = vadd.s32 %v382, %v414
    %v431 = vadd.s32 %v383, %v415
    %v432 = vadd.s32 %v384, %v416
    %v433 = vadd.s32 %v385, %v417
    %v434 = vadd.s32 %v386, %v418
    %v435 = vadd.s32 %v387, %v419
    %v436 = vadd.s32 %v388, %v420
    %v437 = vadd.s32 %v389, %v421
    %v438 = vadd.s32 %v390, %v422
    %v439 = vadd.s32 %v391, %v423
    %v440 = vadd.s32 %v392, %v424
    %vm441 = vcmp.ge.s32.totalorder %v122, 91
    %vm442 = vcmp.ge.s32.totalorder %v124, 91
    %vm443 = vcmp.ge.s32.totalorder %v126, 91
    %vm444 = vcmp.ge.s32.totalorder %v128, 91
    %vm445 = vcmp.ge.s32.totalorder %v130, 91
    %vm446 = vcmp.ge.s32.totalorder %v132, 91
    %vm447 = vcmp.ge.s32.totalorder %v134, 91
    %vm448 = vcmp.ge.s32.totalorder %v136, 91
    %vm449 = vcmp.ge.s32.totalorder %v138, 91
    %vm450 = vcmp.ge.s32.totalorder %v140, 91
    %vm451 = vcmp.ge.s32.totalorder %v142, 91
    %vm452 = vcmp.ge.s32.totalorder %v144, 91
    %vm453 = vcmp.ge.s32.totalorder %v146, 91
    %vm454 = vcmp.ge.s32.totalorder %v148, 91
    %vm455 = vcmp.ge.s32.totalorder %v150, 91
    %vm456 = vcmp.ge.s32.totalorder %v152, 91
    %v457 = vsel %vm441, 1, 0
    %v458 = vsel %vm442, 1, 0
    %v459 = vsel %vm443, 1, 0
    %v460 = vsel %vm444, 1, 0
    %v461 = vsel %vm445, 1, 0
    %v462 = vsel %vm446, 1, 0
    %v463 = vsel %vm447, 1, 0
    %v464 = vsel %vm448, 1, 0
    %v465 = vsel %vm449, 1, 0
    %v466 = vsel %vm450, 1, 0
    %v467 = vsel %vm451, 1, 0
    %v468 = vsel %vm452, 1, 0
    %v469 = vsel %vm453, 1, 0
    %v470 = vsel %vm454, 1, 0
    %v471 = vsel %vm455, 1, 0
    %v472 = vsel %vm456, 1, 0
    %v473 = vadd.s32 %v425, %v457
    %v474 = vadd.s32 %v426, %v458
    %v475 = vadd.s32 %v427, %v459
    %v476 = vadd.s32 %v428, %v460
    %v477 = vadd.s32 %v429, %v461
    %v478 = vadd.s32 %v430, %v462
    %v479 = vadd.s32 %v431, %v463
    %v480 = vadd.s32 %v432, %v464
    %v481 = vadd.s32 %v433, %v465
    %v482 = vadd.s32 %v434, %v466
    %v483 = vadd.s32 %v435, %v467
    %v484 = vadd.s32 %v436, %v468
    %v485 = vadd.s32 %v437, %v469
    %v486 = vadd.s32 %v438, %v470
    %v487 = vadd.s32 %v439, %v471
    %v488 = vadd.s32 %v440, %v472
    %vm489 = vcmp.lt.s32.totalorder %v122, 8
    %vm490 = vcmp.lt.s32.totalorder %v124, 8
    %vm491 = vcmp.lt.s32.totalorder %v126, 8
    %vm492 = vcmp.lt.s32.totalorder %v128, 8
    %vm493 = vcmp.lt.s32.totalorder %v130, 8
    %vm494 = vcmp.lt.s32.totalorder %v132, 8
    %vm495 = vcmp.lt.s32.totalorder %v134, 8
    %vm496 = vcmp.lt.s32.totalorder %v136, 8
    %vm497 = vcmp.lt.s32.totalorder %v138, 8
    %vm498 = vcmp.lt.s32.totalorder %v140, 8
    %vm499 = vcmp.lt.s32.totalorder %v142, 8
    %vm500 = vcmp.lt.s32.totalorder %v144, 8
    %vm501 = vcmp.lt.s32.totalorder %v146, 8
    %vm502 = vcmp.lt.s32.totalorder %v148, 8
    %vm503 = vcmp.lt.s32.totalorder %v150, 8
    %vm504 = vcmp.lt.s32.totalorder %v152, 8
    %v505 = vsel %vm489, %v122, %v473
    %v506 = vsel %vm490, %v124, %v474
    %v507 = vsel %vm491, %v126, %v475
    %v508 = vsel %vm492, %v128, %v476
    %v509 = vsel %vm493, %v130, %v477
    %v510 = vsel %vm494, %v132, %v478
    %v511 = vsel %vm495, %v134, %v479
    %v512 = vsel %vm496, %v136, %v480
    %v513 = vsel %vm497, %v138, %v481
    %v514 = vsel %vm498, %v140, %v482
    %v515 = vsel %vm499, %v142, %v483
    %v516 = vsel %vm500, %v144, %v484
    %v517 = vsel %vm501, %v146, %v485
    %v518 = vsel %vm502, %v148, %v486
    %v519 = vsel %vm503, %v150, %v487
    %v520 = vsel %vm504, %v152, %v488
    %v521 = vadd.s32 %v105, %v505
    %v522 = vadd.s32 %v106, %v506
    %v523 = vadd.s32 %v107, %v507
    %v524 = vadd.s32 %v108, %v508
    %v525 = vadd.s32 %v109, %v509
    %v526 = vadd.s32 %v110, %v510
    %v527 = vadd.s32 %v111, %v511
    %v528 = vadd.s32 %v112, %v512
    %v529 = vadd.s32 %v113, %v513
    %v530 = vadd.s32 %v114, %v514
    %v531 = vadd.s32 %v115, %v515
    %v532 = vadd.s32 %v116, %v516
    %v533 = vadd.s32 %v117, %v517
    %v534 = vadd.s32 %v118, %v518
    %v535 = vadd.s32 %v119, %v519
    %v536 = vadd.s32 %v120, %v520
    %vm537 = vcmp.eq.s32.totalorder %v521, 0
    %vm538 = vcmp.eq.s32.totalorder %v522, 0
    %vm539 = vcmp.eq.s32.totalorder %v523, 0
    %vm540 = vcmp.eq.s32.totalorder %v524, 0
    %vm541 = vcmp.eq.s32.totalorder %v525, 0
    %vm542 = vcmp.eq.s32.totalorder %v526, 0
    %vm543 = vcmp.eq.s32.totalorder %v527, 0
    %vm544 = vcmp.eq.s32.totalorder %v528, 0
    %vm545 = vcmp.eq.s32.totalorder %v529, 0
    %vm546 = vcmp.eq.s32.totalorder %v530, 0
    %vm547 = vcmp.eq.s32.totalorder %v531, 0
    %vm548 = vcmp.eq.s32.totalorder %v532, 0
    %vm549 = vcmp.eq.s32.totalorder %v533, 0
    %vm550 = vcmp.eq.s32.totalorder %v534, 0
    %vm551 = vcmp.eq.s32.totalorder %v535, 0
    %vm552 = vcmp.eq.s32.totalorder %v536, 0
    %s553 = sld [smem:[#allocation2]]
    %v554 = vstv %s553
    %v555 = vsel %vm537, %v554, 0.0
    %v556 = vsel %vm538, %v554, 0.0
    %v557 = vsel %vm539, %v554, 0.0
    %v558 = vsel %vm540, %v554, 0.0
    %v559 = vsel %vm541, %v554, 0.0
    %v560 = vsel %vm542, %v554, 0.0
    %v561 = vsel %vm543, %v554, 0.0
    %v562 = vsel %vm544, %v554, 0.0
    %v563 = vsel %vm545, %v554, 0.0
    %v564 = vsel %vm546, %v554, 0.0
    %v565 = vsel %vm547, %v554, 0.0
    %v566 = vsel %vm548, %v554, 0.0
    %v567 = vsel %vm549, %v554, 0.0
    %v568 = vsel %vm550, %v554, 0.0
    %v569 = vsel %vm551, %v554, 0.0
    %v570 = vsel %vm552, %v554, 0.0
    %vm571 = vcmp.eq.s32.totalorder %v521, 1
    %vm572 = vcmp.eq.s32.totalorder %v522, 1
    %vm573 = vcmp.eq.s32.totalorder %v523, 1
    %vm574 = vcmp.eq.s32.totalorder %v524, 1
    %vm575 = vcmp.eq.s32.totalorder %v525, 1
    %vm576 = vcmp.eq.s32.totalorder %v526, 1
    %vm577 = vcmp.eq.s32.totalorder %v527, 1
    %vm578 = vcmp.eq.s32.totalorder %v528, 1
    %vm579 = vcmp.eq.s32.totalorder %v529, 1
    %vm580 = vcmp.eq.s32.totalorder %v530, 1
    %vm581 = vcmp.eq.s32.totalorder %v531, 1
    %vm582 = vcmp.eq.s32.totalorder %v532, 1
    %vm583 = vcmp.eq.s32.totalorder %v533, 1
    %vm584 = vcmp.eq.s32.totalorder %v534, 1
    %vm585 = vcmp.eq.s32.totalorder %v535, 1
    %vm586 = vcmp.eq.s32.totalorder %v536, 1
    %s587 = sld [smem:[#allocation2 + $0x1]]
    %v588 = vstv %s587
    %v589 = vsel %vm571, %v588, %v555
    %v590 = vsel %vm572, %v588, %v556
    %v591 = vsel %vm573, %v588, %v557
    %v592 = vsel %vm574, %v588, %v558
    %v593 = vsel %vm575, %v588, %v559
    %v594 = vsel %vm576, %v588, %v560
    %v595 = vsel %vm577, %v588, %v561
    %v596 = vsel %vm578, %v588, %v562
    %v597 = vsel %vm579, %v588, %v563
    %v598 = vsel %vm580, %v588, %v564
    %v599 = vsel %vm581, %v588, %v565
    %v600 = vsel %vm582, %v588, %v566
    %v601 = vsel %vm583, %v588, %v567
    %v602 = vsel %vm584, %v588, %v568
    %v603 = vsel %vm585, %v588, %v569
    %v604 = vsel %vm586, %v588, %v570
    %vm605 = vcmp.eq.s32.totalorder %v521, 2
    %vm606 = vcmp.eq.s32.totalorder %v522, 2
    %vm607 = vcmp.eq.s32.totalorder %v523, 2
    %vm608 = vcmp.eq.s32.totalorder %v524, 2
    %vm609 = vcmp.eq.s32.totalorder %v525, 2
    %vm610 = vcmp.eq.s32.totalorder %v526, 2
    %vm611 = vcmp.eq.s32.totalorder %v527, 2
    %vm612 = vcmp.eq.s32.totalorder %v528, 2
    %vm613 = vcmp.eq.s32.totalorder %v529, 2
    %vm614 = vcmp.eq.s32.totalorder %v530, 2
    %vm615 = vcmp.eq.s32.totalorder %v531, 2
    %vm616 = vcmp.eq.s32.totalorder %v532, 2
    %vm617 = vcmp.eq.s32.totalorder %v533, 2
    %vm618 = vcmp.eq.s32.totalorder %v534, 2
    %vm619 = vcmp.eq.s32.totalorder %v535, 2
    %vm620 = vcmp.eq.s32.totalorder %v536, 2
    %s621 = sld [smem:[#allocation2 + $0x2]]
    %v622 = vstv %s621
    %v623 = vsel %vm605, %v622, %v589
    %v624 = vsel %vm606, %v622, %v590
    %v625 = vsel %vm607, %v622, %v591
    %v626 = vsel %vm608, %v622, %v592
    %v627 = vsel %vm609, %v622, %v593
    %v628 = vsel %vm610, %v622, %v594
    %v629 = vsel %vm611, %v622, %v595
    %v630 = vsel %vm612, %v622, %v596
    %v631 = vsel %vm613, %v622, %v597
    %v632 = vsel %vm614, %v622, %v598
    %v633 = vsel %vm615, %v622, %v599
    %v634 = vsel %vm616, %v622, %v600
    %v635 = vsel %vm617, %v622, %v601
    %v636 = vsel %vm618, %v622, %v602
    %v637 = vsel %vm619, %v622, %v603
    %v638 = vsel %vm620, %v622, %v604
    %vm639 = vcmp.eq.s32.totalorder %v521, 3
    %vm640 = vcmp.eq.s32.totalorder %v522, 3
    %vm641 = vcmp.eq.s32.totalorder %v523, 3
    %vm642 = vcmp.eq.s32.totalorder %v524, 3
    %vm643 = vcmp.eq.s32.totalorder %v525, 3
    %vm644 = vcmp.eq.s32.totalorder %v526, 3
    %vm645 = vcmp.eq.s32.totalorder %v527, 3
    %vm646 = vcmp.eq.s32.totalorder %v528, 3
    %vm647 = vcmp.eq.s32.totalorder %v529, 3
    %vm648 = vcmp.eq.s32.totalorder %v530, 3
    %vm649 = vcmp.eq.s32.totalorder %v531, 3
    %vm650 = vcmp.eq.s32.totalorder %v532, 3
    %vm651 = vcmp.eq.s32.totalorder %v533, 3
    %vm652 = vcmp.eq.s32.totalorder %v534, 3
    %vm653 = vcmp.eq.s32.totalorder %v535, 3
    %vm654 = vcmp.eq.s32.totalorder %v536, 3
    %s655 = sld [smem:[#allocation2 + $0x3]]
    %v656 = vstv %s655
    %v657 = vsel %vm639, %v656, %v623
    %v658 = vsel %vm640, %v656, %v624
    %v659 = vsel %vm641, %v656, %v625
    %v660 = vsel %vm642, %v656, %v626
    %v661 = vsel %vm643, %v656, %v627
    %v662 = vsel %vm644, %v656, %v628
    %v663 = vsel %vm645, %v656, %v629
    %v664 = vsel %vm646, %v656, %v630
    %v665 = vsel %vm647, %v656, %v631
    %v666 = vsel %vm648, %v656, %v632
    %v667 = vsel %vm649, %v656, %v633
    %v668 = vsel %vm650, %v656, %v634
    %v669 = vsel %vm651, %v656, %v635
    %v670 = vsel %vm652, %v656, %v636
    %v671 = vsel %vm653, %v656, %v637
    %v672 = vsel %vm654, %v656, %v638
    %vm673 = vcmp.eq.s32.totalorder %v521, 4
    %vm674 = vcmp.eq.s32.totalorder %v522, 4
    %vm675 = vcmp.eq.s32.totalorder %v523, 4
    %vm676 = vcmp.eq.s32.totalorder %v524, 4
    %vm677 = vcmp.eq.s32.totalorder %v525, 4
    %vm678 = vcmp.eq.s32.totalorder %v526, 4
    %vm679 = vcmp.eq.s32.totalorder %v527, 4
    %vm680 = vcmp.eq.s32.totalorder %v528, 4
    %vm681 = vcmp.eq.s32.totalorder %v529, 4
    %vm682 = vcmp.eq.s32.totalorder %v530, 4
    %vm683 = vcmp.eq.s32.totalorder %v531, 4
    %vm684 = vcmp.eq.s32.totalorder %v532, 4
    %vm685 = vcmp.eq.s32.totalorder %v533, 4
    %vm686 = vcmp.eq.s32.totalorder %v534, 4
    %vm687 = vcmp.eq.s32.totalorder %v535, 4
    %vm688 = vcmp.eq.s32.totalorder %v536, 4
    %s689 = sld [smem:[#allocation2 + $0x4]]
    %v690 = vstv %s689
    %v691 = vsel %vm673, %v690, %v657
    %v692 = vsel %vm674, %v690, %v658
    %v693 = vsel %vm675, %v690, %v659
    %v694 = vsel %vm676, %v690, %v660
    %v695 = vsel %vm677, %v690, %v661
    %v696 = vsel %vm678, %v690, %v662
    %v697 = vsel %vm679, %v690, %v663
    %v698 = vsel %vm680, %v690, %v664
    %v699 = vsel %vm681, %v690, %v665
    %v700 = vsel %vm682, %v690, %v666
    %v701 = vsel %vm683, %v690, %v667
    %v702 = vsel %vm684, %v690, %v668
    %v703 = vsel %vm685, %v690, %v669
    %v704 = vsel %vm686, %v690, %v670
    %v705 = vsel %vm687, %v690, %v671
    %v706 = vsel %vm688, %v690, %v672
    %vm707 = vcmp.eq.s32.totalorder %v521, 5
    %vm708 = vcmp.eq.s32.totalorder %v522, 5
    %vm709 = vcmp.eq.s32.totalorder %v523, 5
    %vm710 = vcmp.eq.s32.totalorder %v524, 5
    %vm711 = vcmp.eq.s32.totalorder %v525, 5
    %vm712 = vcmp.eq.s32.totalorder %v526, 5
    %vm713 = vcmp.eq.s32.totalorder %v527, 5
    %vm714 = vcmp.eq.s32.totalorder %v528, 5
    %vm715 = vcmp.eq.s32.totalorder %v529, 5
    %vm716 = vcmp.eq.s32.totalorder %v530, 5
    %vm717 = vcmp.eq.s32.totalorder %v531, 5
    %vm718 = vcmp.eq.s32.totalorder %v532, 5
    %vm719 = vcmp.eq.s32.totalorder %v533, 5
    %vm720 = vcmp.eq.s32.totalorder %v534, 5
    %vm721 = vcmp.eq.s32.totalorder %v535, 5
    %vm722 = vcmp.eq.s32.totalorder %v536, 5
    %s723 = sld [smem:[#allocation2 + $0x5]]
    %v724 = vstv %s723
    %v725 = vsel %vm707, %v724, %v691
    %v726 = vsel %vm708, %v724, %v692
    %v727 = vsel %vm709, %v724, %v693
    %v728 = vsel %vm710, %v724, %v694
    %v729 = vsel %vm711, %v724, %v695
    %v730 = vsel %vm712, %v724, %v696
    %v731 = vsel %vm713, %v724, %v697
    %v732 = vsel %vm714, %v724, %v698
    %v733 = vsel %vm715, %v724, %v699
    %v734 = vsel %vm716, %v724, %v700
    %v735 = vsel %vm717, %v724, %v701
    %v736 = vsel %vm718, %v724, %v702
    %v737 = vsel %vm719, %v724, %v703
    %v738 = vsel %vm720, %v724, %v704
    %v739 = vsel %vm721, %v724, %v705
    %v740 = vsel %vm722, %v724, %v706
    %vm741 = vcmp.eq.s32.totalorder %v521, 6
    %vm742 = vcmp.eq.s32.totalorder %v522, 6
    %vm743 = vcmp.eq.s32.totalorder %v523, 6
    %vm744 = vcmp.eq.s32.totalorder %v524, 6
    %vm745 = vcmp.eq.s32.totalorder %v525, 6
    %vm746 = vcmp.eq.s32.totalorder %v526, 6
    %vm747 = vcmp.eq.s32.totalorder %v527, 6
    %vm748 = vcmp.eq.s32.totalorder %v528, 6
    %vm749 = vcmp.eq.s32.totalorder %v529, 6
    %vm750 = vcmp.eq.s32.totalorder %v530, 6
    %vm751 = vcmp.eq.s32.totalorder %v531, 6
    %vm752 = vcmp.eq.s32.totalorder %v532, 6
    %vm753 = vcmp.eq.s32.totalorder %v533, 6
    %vm754 = vcmp.eq.s32.totalorder %v534, 6
    %vm755 = vcmp.eq.s32.totalorder %v535, 6
    %vm756 = vcmp.eq.s32.totalorder %v536, 6
    %s757 = sld [smem:[#allocation2 + $0x6]]
    %v758 = vstv %s757
    %v759 = vsel %vm741, %v758, %v725
    %v760 = vsel %vm742, %v758, %v726
    %v761 = vsel %vm743, %v758, %v727
    %v762 = vsel %vm744, %v758, %v728
    %v763 = vsel %vm745, %v758, %v729
    %v764 = vsel %vm746, %v758, %v730
    %v765 = vsel %vm747, %v758, %v731
    %v766 = vsel %vm748, %v758, %v732
    %v767 = vsel %vm749, %v758, %v733
    %v768 = vsel %vm750, %v758, %v734
    %v769 = vsel %vm751, %v758, %v735
    %v770 = vsel %vm752, %v758, %v736
    %v771 = vsel %vm753, %v758, %v737
    %v772 = vsel %vm754, %v758, %v738
    %v773 = vsel %vm755, %v758, %v739
    %v774 = vsel %vm756, %v758, %v740
    %vm775 = vcmp.eq.s32.totalorder %v521, 7
    %vm776 = vcmp.eq.s32.totalorder %v522, 7
    %vm777 = vcmp.eq.s32.totalorder %v523, 7
    %vm778 = vcmp.eq.s32.totalorder %v524, 7
    %vm779 = vcmp.eq.s32.totalorder %v525, 7
    %vm780 = vcmp.eq.s32.totalorder %v526, 7
    %vm781 = vcmp.eq.s32.totalorder %v527, 7
    %vm782 = vcmp.eq.s32.totalorder %v528, 7
    %vm783 = vcmp.eq.s32.totalorder %v529, 7
    %vm784 = vcmp.eq.s32.totalorder %v530, 7
    %vm785 = vcmp.eq.s32.totalorder %v531, 7
    %vm786 = vcmp.eq.s32.totalorder %v532, 7
    %vm787 = vcmp.eq.s32.totalorder %v533, 7
    %vm788 = vcmp.eq.s32.totalorder %v534, 7
    %vm789 = vcmp.eq.s32.totalorder %v535, 7
    %vm790 = vcmp.eq.s32.totalorder %v536, 7
    %s791 = sld [smem:[#allocation2 + $0x7]]
    %v792 = vstv %s791
    %v793 = vsel %vm775, %v792, %v759
    %v794 = vsel %vm776, %v792, %v760
    %v795 = vsel %vm777, %v792, %v761
    %v796 = vsel %vm778, %v792, %v762
    %v797 = vsel %vm779, %v792, %v763
    %v798 = vsel %vm780, %v792, %v764
    %v799 = vsel %vm781, %v792, %v765
    %v800 = vsel %vm782, %v792, %v766
    %v801 = vsel %vm783, %v792, %v767
    %v802 = vsel %vm784, %v792, %v768
    %v803 = vsel %vm785, %v792, %v769
    %v804 = vsel %vm786, %v792, %v770
    %v805 = vsel %vm787, %v792, %v771
    %v806 = vsel %vm788, %v792, %v772
    %v807 = vsel %vm789, %v792, %v773
    %v808 = vsel %vm790, %v792, %v774
    %vm809 = vcmp.eq.s32.totalorder %v521, 8
    %vm810 = vcmp.eq.s32.totalorder %v522, 8
    %vm811 = vcmp.eq.s32.totalorder %v523, 8
    %vm812 = vcmp.eq.s32.totalorder %v524, 8
    %vm813 = vcmp.eq.s32.totalorder %v525, 8
    %vm814 = vcmp.eq.s32.totalorder %v526, 8
    %vm815 = vcmp.eq.s32.totalorder %v527, 8
    %vm816 = vcmp.eq.s32.totalorder %v528, 8
    %vm817 = vcmp.eq.s32.totalorder %v529, 8
    %vm818 = vcmp.eq.s32.totalorder %v530, 8
    %vm819 = vcmp.eq.s32.totalorder %v531, 8
    %vm820 = vcmp.eq.s32.totalorder %v532, 8
    %vm821 = vcmp.eq.s32.totalorder %v533, 8
    %vm822 = vcmp.eq.s32.totalorder %v534, 8
    %vm823 = vcmp.eq.s32.totalorder %v535, 8
    %vm824 = vcmp.eq.s32.totalorder %v536, 8
    %s825 = sld [smem:[#allocation2 + $0x8]]
    %v826 = vstv %s825
    %v827 = vsel %vm809, %v826, %v793
    %v828 = vsel %vm810, %v826, %v794
    %v829 = vsel %vm811, %v826, %v795
    %v830 = vsel %vm812, %v826, %v796
    %v831 = vsel %vm813, %v826, %v797
    %v832 = vsel %vm814, %v826, %v798
    %v833 = vsel %vm815, %v826, %v799
    %v834 = vsel %vm816, %v826, %v800
    %v835 = vsel %vm817, %v826, %v801
    %v836 = vsel %vm818, %v826, %v802
    %v837 = vsel %vm819, %v826, %v803
    %v838 = vsel %vm820, %v826, %v804
    %v839 = vsel %vm821, %v826, %v805
    %v840 = vsel %vm822, %v826, %v806
    %v841 = vsel %vm823, %v826, %v807
    %v842 = vsel %vm824, %v826, %v808
    %vm843 = vcmp.eq.s32.totalorder %v521, 9
    %vm844 = vcmp.eq.s32.totalorder %v522, 9
    %vm845 = vcmp.eq.s32.totalorder %v523, 9
    %vm846 = vcmp.eq.s32.totalorder %v524, 9
    %vm847 = vcmp.eq.s32.totalorder %v525, 9
    %vm848 = vcmp.eq.s32.totalorder %v526, 9
    %vm849 = vcmp.eq.s32.totalorder %v527, 9
    %vm850 = vcmp.eq.s32.totalorder %v528, 9
    %vm851 = vcmp.eq.s32.totalorder %v529, 9
    %vm852 = vcmp.eq.s32.totalorder %v530, 9
    %vm853 = vcmp.eq.s32.totalorder %v531, 9
    %vm854 = vcmp.eq.s32.totalorder %v532, 9
    %vm855 = vcmp.eq.s32.totalorder %v533, 9
    %vm856 = vcmp.eq.s32.totalorder %v534, 9
    %vm857 = vcmp.eq.s32.totalorder %v535, 9
    %vm858 = vcmp.eq.s32.totalorder %v536, 9
    %s859 = sld [smem:[#allocation2 + $0x9]]
    %v860 = vstv %s859
    %v861 = vsel %vm843, %v860, %v827
    %v862 = vsel %vm844, %v860, %v828
    %v863 = vsel %vm845, %v860, %v829
    %v864 = vsel %vm846, %v860, %v830
    %v865 = vsel %vm847, %v860, %v831
    %v866 = vsel %vm848, %v860, %v832
    %v867 = vsel %vm849, %v860, %v833
    %v868 = vsel %vm850, %v860, %v834
    %v869 = vsel %vm851, %v860, %v835
    %v870 = vsel %vm852, %v860, %v836
    %v871 = vsel %vm853, %v860, %v837
    %v872 = vsel %vm854, %v860, %v838
    %v873 = vsel %vm855, %v860, %v839
    %v874 = vsel %vm856, %v860, %v840
    %v875 = vsel %vm857, %v860, %v841
    %v876 = vsel %vm858, %v860, %v842
    %vm877 = vcmp.eq.s32.totalorder %v521, 10
    %vm878 = vcmp.eq.s32.totalorder %v522, 10
    %vm879 = vcmp.eq.s32.totalorder %v523, 10
    %vm880 = vcmp.eq.s32.totalorder %v524, 10
    %vm881 = vcmp.eq.s32.totalorder %v525, 10
    %vm882 = vcmp.eq.s32.totalorder %v526, 10
    %vm883 = vcmp.eq.s32.totalorder %v527, 10
    %vm884 = vcmp.eq.s32.totalorder %v528, 10
    %vm885 = vcmp.eq.s32.totalorder %v529, 10
    %vm886 = vcmp.eq.s32.totalorder %v530, 10
    %vm887 = vcmp.eq.s32.totalorder %v531, 10
    %vm888 = vcmp.eq.s32.totalorder %v532, 10
    %vm889 = vcmp.eq.s32.totalorder %v533, 10
    %vm890 = vcmp.eq.s32.totalorder %v534, 10
    %vm891 = vcmp.eq.s32.totalorder %v535, 10
    %vm892 = vcmp.eq.s32.totalorder %v536, 10
    %s893 = sld [smem:[#allocation2 + $0xa]]
    %v894 = vstv %s893
    %v895 = vsel %vm877, %v894, %v861
    %v896 = vsel %vm878, %v894, %v862
    %v897 = vsel %vm879, %v894, %v863
    %v898 = vsel %vm880, %v894, %v864
    %v899 = vsel %vm881, %v894, %v865
    %v900 = vsel %vm882, %v894, %v866
    %v901 = vsel %vm883, %v894, %v867
    %v902 = vsel %vm884, %v894, %v868
    %v903 = vsel %vm885, %v894, %v869
    %v904 = vsel %vm886, %v894, %v870
    %v905 = vsel %vm887, %v894, %v871
    %v906 = vsel %vm888, %v894, %v872
    %v907 = vsel %vm889, %v894, %v873
    %v908 = vsel %vm890, %v894, %v874
    %v909 = vsel %vm891, %v894, %v875
    %v910 = vsel %vm892, %v894, %v876
    %vm911 = vcmp.eq.s32.totalorder %v521, 11
    %vm912 = vcmp.eq.s32.totalorder %v522, 11
    %vm913 = vcmp.eq.s32.totalorder %v523, 11
    %vm914 = vcmp.eq.s32.totalorder %v524, 11
    %vm915 = vcmp.eq.s32.totalorder %v525, 11
    %vm916 = vcmp.eq.s32.totalorder %v526, 11
    %vm917 = vcmp.eq.s32.totalorder %v527, 11
    %vm918 = vcmp.eq.s32.totalorder %v528, 11
    %vm919 = vcmp.eq.s32.totalorder %v529, 11
    %vm920 = vcmp.eq.s32.totalorder %v530, 11
    %vm921 = vcmp.eq.s32.totalorder %v531, 11
    %vm922 = vcmp.eq.s32.totalorder %v532, 11
    %vm923 = vcmp.eq.s32.totalorder %v533, 11
    %vm924 = vcmp.eq.s32.totalorder %v534, 11
    %vm925 = vcmp.eq.s32.totalorder %v535, 11
    %vm926 = vcmp.eq.s32.totalorder %v536, 11
    %s927 = sld [smem:[#allocation2 + $0xb]]
    %v928 = vstv %s927
    %v929 = vsel %vm911, %v928, %v895
    %v930 = vsel %vm912, %v928, %v896
    %v931 = vsel %vm913, %v928, %v897
    %v932 = vsel %vm914, %v928, %v898
    %v933 = vsel %vm915, %v928, %v899
    %v934 = vsel %vm916, %v928, %v900
    %v935 = vsel %vm917, %v928, %v901
    %v936 = vsel %vm918, %v928, %v902
    %v937 = vsel %vm919, %v928, %v903
    %v938 = vsel %vm920, %v928, %v904
    %v939 = vsel %vm921, %v928, %v905
    %v940 = vsel %vm922, %v928, %v906
    %v941 = vsel %vm923, %v928, %v907
    %v942 = vsel %vm924, %v928, %v908
    %v943 = vsel %vm925, %v928, %v909
    %v944 = vsel %vm926, %v928, %v910
    %vm945 = vcmp.eq.s32.totalorder %v521, 12
    %vm946 = vcmp.eq.s32.totalorder %v522, 12
    %vm947 = vcmp.eq.s32.totalorder %v523, 12
    %vm948 = vcmp.eq.s32.totalorder %v524, 12
    %vm949 = vcmp.eq.s32.totalorder %v525, 12
    %vm950 = vcmp.eq.s32.totalorder %v526, 12
    %vm951 = vcmp.eq.s32.totalorder %v527, 12
    %vm952 = vcmp.eq.s32.totalorder %v528, 12
    %vm953 = vcmp.eq.s32.totalorder %v529, 12
    %vm954 = vcmp.eq.s32.totalorder %v530, 12
    %vm955 = vcmp.eq.s32.totalorder %v531, 12
    %vm956 = vcmp.eq.s32.totalorder %v532, 12
    %vm957 = vcmp.eq.s32.totalorder %v533, 12
    %vm958 = vcmp.eq.s32.totalorder %v534, 12
    %vm959 = vcmp.eq.s32.totalorder %v535, 12
    %vm960 = vcmp.eq.s32.totalorder %v536, 12
    %s961 = sld [smem:[#allocation2 + $0xc]]
    %v962 = vstv %s961
    %v963 = vsel %vm945, %v962, %v929
    %v964 = vsel %vm946, %v962, %v930
    %v965 = vsel %vm947, %v962, %v931
    %v966 = vsel %vm948, %v962, %v932
    %v967 = vsel %vm949, %v962, %v933
    %v968 = vsel %vm950, %v962, %v934
    %v969 = vsel %vm951, %v962, %v935
    %v970 = vsel %vm952, %v962, %v936
    %v971 = vsel %vm953, %v962, %v937
    %v972 = vsel %vm954, %v962, %v938
    %v973 = vsel %vm955, %v962, %v939
    %v974 = vsel %vm956, %v962, %v940
    %v975 = vsel %vm957, %v962, %v941
    %v976 = vsel %vm958, %v962, %v942
    %v977 = vsel %vm959, %v962, %v943
    %v978 = vsel %vm960, %v962, %v944
    %vm979 = vcmp.eq.s32.totalorder %v521, 13
    %vm980 = vcmp.eq.s32.totalorder %v522, 13
    %vm981 = vcmp.eq.s32.totalorder %v523, 13
    %vm982 = vcmp.eq.s32.totalorder %v524, 13
    %vm983 = vcmp.eq.s32.totalorder %v525, 13
    %vm984 = vcmp.eq.s32.totalorder %v526, 13
    %vm985 = vcmp.eq.s32.totalorder %v527, 13
    %vm986 = vcmp.eq.s32.totalorder %v528, 13
    %vm987 = vcmp.eq.s32.totalorder %v529, 13
    %vm988 = vcmp.eq.s32.totalorder %v530, 13
    %vm989 = vcmp.eq.s32.totalorder %v531, 13
    %vm990 = vcmp.eq.s32.totalorder %v532, 13
    %vm991 = vcmp.eq.s32.totalorder %v533, 13
    %vm992 = vcmp.eq.s32.totalorder %v534, 13
    %vm993 = vcmp.eq.s32.totalorder %v535, 13
    %vm994 = vcmp.eq.s32.totalorder %v536, 13
    %s995 = sld [smem:[#allocation2 + $0xd]]
    %v996 = vstv %s995
    %v997 = vsel %vm979, %v996, %v963
    %v998 = vsel %vm980, %v996, %v964
    %v999 = vsel %vm981, %v996, %v965
    %v1000 = vsel %vm982, %v996, %v966
    %v1001 = vsel %vm983, %v996, %v967
    %v1002 = vsel %vm984, %v996, %v968
    %v1003 = vsel %vm985, %v996, %v969
    %v1004 = vsel %vm986, %v996, %v970
    %v1005 = vsel %vm987, %v996, %v971
    %v1006 = vsel %vm988, %v996, %v972
    %v1007 = vsel %vm989, %v996, %v973
    %v1008 = vsel %vm990, %v996, %v974
    %v1009 = vsel %vm991, %v996, %v975
    %v1010 = vsel %vm992, %v996, %v976
    %v1011 = vsel %vm993, %v996, %v977
    %v1012 = vsel %vm994, %v996, %v978
    %vm1013 = vcmp.eq.s32.totalorder %v521, 14
    %vm1014 = vcmp.eq.s32.totalorder %v522, 14
    %vm1015 = vcmp.eq.s32.totalorder %v523, 14
    %vm1016 = vcmp.eq.s32.totalorder %v524, 14
    %vm1017 = vcmp.eq.s32.totalorder %v525, 14
    %vm1018 = vcmp.eq.s32.totalorder %v526, 14
    %vm1019 = vcmp.eq.s32.totalorder %v527, 14
    %vm1020 = vcmp.eq.s32.totalorder %v528, 14
    %vm1021 = vcmp.eq.s32.totalorder %v529, 14
    %vm1022 = vcmp.eq.s32.totalorder %v530, 14
    %vm1023 = vcmp.eq.s32.totalorder %v531, 14
    %vm1024 = vcmp.eq.s32.totalorder %v532, 14
    %vm1025 = vcmp.eq.s32.totalorder %v533, 14
    %vm1026 = vcmp.eq.s32.totalorder %v534, 14
    %vm1027 = vcmp.eq.s32.totalorder %v535, 14
    %vm1028 = vcmp.eq.s32.totalorder %v536, 14
    %s1029 = sld [smem:[#allocation2 + $0xe]]
    %v1030 = vstv %s1029
    %v1031 = vsel %vm1013, %v1030, %v997
    %v1032 = vsel %vm1014, %v1030, %v998
    %v1033 = vsel %vm1015, %v1030, %v999
    %v1034 = vsel %vm1016, %v1030, %v1000
    %v1035 = vsel %vm1017, %v1030, %v1001
    %v1036 = vsel %vm1018, %v1030, %v1002
    %v1037 = vsel %vm1019, %v1030, %v1003
    %v1038 = vsel %vm1020, %v1030, %v1004
    %v1039 = vsel %vm1021, %v1030, %v1005
    %v1040 = vsel %vm1022, %v1030, %v1006
    %v1041 = vsel %vm1023, %v1030, %v1007
    %v1042 = vsel %vm1024, %v1030, %v1008
    %v1043 = vsel %vm1025, %v1030, %v1009
    %v1044 = vsel %vm1026, %v1030, %v1010
    %v1045 = vsel %vm1027, %v1030, %v1011
    %v1046 = vsel %vm1028, %v1030, %v1012
    %vm1047 = vcmp.eq.s32.totalorder %v521, 15
    %vm1048 = vcmp.eq.s32.totalorder %v522, 15
    %vm1049 = vcmp.eq.s32.totalorder %v523, 15
    %vm1050 = vcmp.eq.s32.totalorder %v524, 15
    %vm1051 = vcmp.eq.s32.totalorder %v525, 15
    %vm1052 = vcmp.eq.s32.totalorder %v526, 15
    %vm1053 = vcmp.eq.s32.totalorder %v527, 15
    %vm1054 = vcmp.eq.s32.totalorder %v528, 15
    %vm1055 = vcmp.eq.s32.totalorder %v529, 15
    %vm1056 = vcmp.eq.s32.totalorder %v530, 15
    %vm1057 = vcmp.eq.s32.totalorder %v531, 15
    %vm1058 = vcmp.eq.s32.totalorder %v532, 15
    %vm1059 = vcmp.eq.s32.totalorder %v533, 15
    %vm1060 = vcmp.eq.s32.totalorder %v534, 15
    %vm1061 = vcmp.eq.s32.totalorder %v535, 15
    %vm1062 = vcmp.eq.s32.totalorder %v536, 15
    %s1063 = sld [smem:[#allocation2 + $0xf]]
    %v1064 = vstv %s1063
    %v1065 = vsel %vm1047, %v1064, %v1031
    %v1066 = vsel %vm1048, %v1064, %v1032
    %v1067 = vsel %vm1049, %v1064, %v1033
    %v1068 = vsel %vm1050, %v1064, %v1034
    %v1069 = vsel %vm1051, %v1064, %v1035
    %v1070 = vsel %vm1052, %v1064, %v1036
    %v1071 = vsel %vm1053, %v1064, %v1037
    %v1072 = vsel %vm1054, %v1064, %v1038
    %v1073 = vsel %vm1055, %v1064, %v1039
    %v1074 = vsel %vm1056, %v1064, %v1040
    %v1075 = vsel %vm1057, %v1064, %v1041
    %v1076 = vsel %vm1058, %v1064, %v1042
    %v1077 = vsel %vm1059, %v1064, %v1043
    %v1078 = vsel %vm1060, %v1064, %v1044
    %v1079 = vsel %vm1061, %v1064, %v1045
    %v1080 = vsel %vm1062, %v1064, %v1046
    %vm1081 = vcmp.eq.s32.totalorder %v521, 16
    %vm1082 = vcmp.eq.s32.totalorder %v522, 16
    %vm1083 = vcmp.eq.s32.totalorder %v523, 16
    %vm1084 = vcmp.eq.s32.totalorder %v524, 16
    %vm1085 = vcmp.eq.s32.totalorder %v525, 16
    %vm1086 = vcmp.eq.s32.totalorder %v526, 16
    %vm1087 = vcmp.eq.s32.totalorder %v527, 16
    %vm1088 = vcmp.eq.s32.totalorder %v528, 16
    %vm1089 = vcmp.eq.s32.totalorder %v529, 16
    %vm1090 = vcmp.eq.s32.totalorder %v530, 16
    %vm1091 = vcmp.eq.s32.totalorder %v531, 16
    %vm1092 = vcmp.eq.s32.totalorder %v532, 16
    %vm1093 = vcmp.eq.s32.totalorder %v533, 16
    %vm1094 = vcmp.eq.s32.totalorder %v534, 16
    %vm1095 = vcmp.eq.s32.totalorder %v535, 16
    %vm1096 = vcmp.eq.s32.totalorder %v536, 16
    %s1097 = sld [smem:[#allocation2 + $0x10]]
    %v1098 = vstv %s1097
    %v1099 = vsel %vm1081, %v1098, %v1065
    %v1100 = vsel %vm1082, %v1098, %v1066
    %v1101 = vsel %vm1083, %v1098, %v1067
    %v1102 = vsel %vm1084, %v1098, %v1068
    %v1103 = vsel %vm1085, %v1098, %v1069
    %v1104 = vsel %vm1086, %v1098, %v1070
    %v1105 = vsel %vm1087, %v1098, %v1071
    %v1106 = vsel %vm1088, %v1098, %v1072
    %v1107 = vsel %vm1089, %v1098, %v1073
    %v1108 = vsel %vm1090, %v1098, %v1074
    %v1109 = vsel %vm1091, %v1098, %v1075
    %v1110 = vsel %vm1092, %v1098, %v1076
    %v1111 = vsel %vm1093, %v1098, %v1077
    %v1112 = vsel %vm1094, %v1098, %v1078
    %v1113 = vsel %vm1095, %v1098, %v1079
    %v1114 = vsel %vm1096, %v1098, %v1080
    %vm1115 = vcmp.eq.s32.totalorder %v521, 17
    %vm1116 = vcmp.eq.s32.totalorder %v522, 17
    %vm1117 = vcmp.eq.s32.totalorder %v523, 17
    %vm1118 = vcmp.eq.s32.totalorder %v524, 17
    %vm1119 = vcmp.eq.s32.totalorder %v525, 17
    %vm1120 = vcmp.eq.s32.totalorder %v526, 17
    %vm1121 = vcmp.eq.s32.totalorder %v527, 17
    %vm1122 = vcmp.eq.s32.totalorder %v528, 17
    %vm1123 = vcmp.eq.s32.totalorder %v529, 17
    %vm1124 = vcmp.eq.s32.totalorder %v530, 17
    %vm1125 = vcmp.eq.s32.totalorder %v531, 17
    %vm1126 = vcmp.eq.s32.totalorder %v532, 17
    %vm1127 = vcmp.eq.s32.totalorder %v533, 17
    %vm1128 = vcmp.eq.s32.totalorder %v534, 17
    %vm1129 = vcmp.eq.s32.totalorder %v535, 17
    %vm1130 = vcmp.eq.s32.totalorder %v536, 17
    %s1131 = sld [smem:[#allocation2 + $0x11]]
    %v1132 = vstv %s1131
    %v1133 = vsel %vm1115, %v1132, %v1099
    %v1134 = vsel %vm1116, %v1132, %v1100
    %v1135 = vsel %vm1117, %v1132, %v1101
    %v1136 = vsel %vm1118, %v1132, %v1102
    %v1137 = vsel %vm1119, %v1132, %v1103
    %v1138 = vsel %vm1120, %v1132, %v1104
    %v1139 = vsel %vm1121, %v1132, %v1105
    %v1140 = vsel %vm1122, %v1132, %v1106
    %v1141 = vsel %vm1123, %v1132, %v1107
    %v1142 = vsel %vm1124, %v1132, %v1108
    %v1143 = vsel %vm1125, %v1132, %v1109
    %v1144 = vsel %vm1126, %v1132, %v1110
    %v1145 = vsel %vm1127, %v1132, %v1111
    %v1146 = vsel %vm1128, %v1132, %v1112
    %v1147 = vsel %vm1129, %v1132, %v1113
    %v1148 = vsel %vm1130, %v1132, %v1114
    %vm1149 = vcmp.eq.s32.totalorder %v521, 18
    %vm1150 = vcmp.eq.s32.totalorder %v522, 18
    %vm1151 = vcmp.eq.s32.totalorder %v523, 18
    %vm1152 = vcmp.eq.s32.totalorder %v524, 18
    %vm1153 = vcmp.eq.s32.totalorder %v525, 18
    %vm1154 = vcmp.eq.s32.totalorder %v526, 18
    %vm1155 = vcmp.eq.s32.totalorder %v527, 18
    %vm1156 = vcmp.eq.s32.totalorder %v528, 18
    %vm1157 = vcmp.eq.s32.totalorder %v529, 18
    %vm1158 = vcmp.eq.s32.totalorder %v530, 18
    %vm1159 = vcmp.eq.s32.totalorder %v531, 18
    %vm1160 = vcmp.eq.s32.totalorder %v532, 18
    %vm1161 = vcmp.eq.s32.totalorder %v533, 18
    %vm1162 = vcmp.eq.s32.totalorder %v534, 18
    %vm1163 = vcmp.eq.s32.totalorder %v535, 18
    %vm1164 = vcmp.eq.s32.totalorder %v536, 18
    %s1165 = sld [smem:[#allocation2 + $0x12]]
    %v1166 = vstv %s1165
    %v1167 = vsel %vm1149, %v1166, %v1133
    %v1168 = vsel %vm1150, %v1166, %v1134
    %v1169 = vsel %vm1151, %v1166, %v1135
    %v1170 = vsel %vm1152, %v1166, %v1136
    %v1171 = vsel %vm1153, %v1166, %v1137
    %v1172 = vsel %vm1154, %v1166, %v1138
    %v1173 = vsel %vm1155, %v1166, %v1139
    %v1174 = vsel %vm1156, %v1166, %v1140
    %v1175 = vsel %vm1157, %v1166, %v1141
    %v1176 = vsel %vm1158, %v1166, %v1142
    %v1177 = vsel %vm1159, %v1166, %v1143
    %v1178 = vsel %vm1160, %v1166, %v1144
    %v1179 = vsel %vm1161, %v1166, %v1145
    %v1180 = vsel %vm1162, %v1166, %v1146
    %v1181 = vsel %vm1163, %v1166, %v1147
    %v1182 = vsel %vm1164, %v1166, %v1148
    %vm1183 = vcmp.eq.s32.totalorder %v521, 19
    %vm1184 = vcmp.eq.s32.totalorder %v522, 19
    %vm1185 = vcmp.eq.s32.totalorder %v523, 19
    %vm1186 = vcmp.eq.s32.totalorder %v524, 19
    %vm1187 = vcmp.eq.s32.totalorder %v525, 19
    %vm1188 = vcmp.eq.s32.totalorder %v526, 19
    %vm1189 = vcmp.eq.s32.totalorder %v527, 19
    %vm1190 = vcmp.eq.s32.totalorder %v528, 19
    %vm1191 = vcmp.eq.s32.totalorder %v529, 19
    %vm1192 = vcmp.eq.s32.totalorder %v530, 19
    %vm1193 = vcmp.eq.s32.totalorder %v531, 19
    %vm1194 = vcmp.eq.s32.totalorder %v532, 19
    %vm1195 = vcmp.eq.s32.totalorder %v533, 19
    %vm1196 = vcmp.eq.s32.totalorder %v534, 19
    %vm1197 = vcmp.eq.s32.totalorder %v535, 19
    %vm1198 = vcmp.eq.s32.totalorder %v536, 19
    %s1199 = sld [smem:[#allocation2 + $0x13]]
    %v1200 = vstv %s1199
    %v1201 = vsel %vm1183, %v1200, %v1167
    %v1202 = vsel %vm1184, %v1200, %v1168
    %v1203 = vsel %vm1185, %v1200, %v1169
    %v1204 = vsel %vm1186, %v1200, %v1170
    %v1205 = vsel %vm1187, %v1200, %v1171
    %v1206 = vsel %vm1188, %v1200, %v1172
    %v1207 = vsel %vm1189, %v1200, %v1173
    %v1208 = vsel %vm1190, %v1200, %v1174
    %v1209 = vsel %vm1191, %v1200, %v1175
    %v1210 = vsel %vm1192, %v1200, %v1176
    %v1211 = vsel %vm1193, %v1200, %v1177
    %v1212 = vsel %vm1194, %v1200, %v1178
    %v1213 = vsel %vm1195, %v1200, %v1179
    %v1214 = vsel %vm1196, %v1200, %v1180
    %v1215 = vsel %vm1197, %v1200, %v1181
    %v1216 = vsel %vm1198, %v1200, %v1182
    %vm1217 = vcmp.eq.s32.totalorder %v521, 20
    %vm1218 = vcmp.eq.s32.totalorder %v522, 20
    %vm1219 = vcmp.eq.s32.totalorder %v523, 20
    %vm1220 = vcmp.eq.s32.totalorder %v524, 20
    %vm1221 = vcmp.eq.s32.totalorder %v525, 20
    %vm1222 = vcmp.eq.s32.totalorder %v526, 20
    %vm1223 = vcmp.eq.s32.totalorder %v527, 20
    %vm1224 = vcmp.eq.s32.totalorder %v528, 20
    %vm1225 = vcmp.eq.s32.totalorder %v529, 20
    %vm1226 = vcmp.eq.s32.totalorder %v530, 20
    %vm1227 = vcmp.eq.s32.totalorder %v531, 20
    %vm1228 = vcmp.eq.s32.totalorder %v532, 20
    %vm1229 = vcmp.eq.s32.totalorder %v533, 20
    %vm1230 = vcmp.eq.s32.totalorder %v534, 20
    %vm1231 = vcmp.eq.s32.totalorder %v535, 20
    %vm1232 = vcmp.eq.s32.totalorder %v536, 20
    %s1233 = sld [smem:[#allocation2 + $0x14]]
    %v1234 = vstv %s1233
    %v1235 = vsel %vm1217, %v1234, %v1201
    %v1236 = vsel %vm1218, %v1234, %v1202
    %v1237 = vsel %vm1219, %v1234, %v1203
    %v1238 = vsel %vm1220, %v1234, %v1204
    %v1239 = vsel %vm1221, %v1234, %v1205
    %v1240 = vsel %vm1222, %v1234, %v1206
    %v1241 = vsel %vm1223, %v1234, %v1207
    %v1242 = vsel %vm1224, %v1234, %v1208
    %v1243 = vsel %vm1225, %v1234, %v1209
    %v1244 = vsel %vm1226, %v1234, %v1210
    %v1245 = vsel %vm1227, %v1234, %v1211
    %v1246 = vsel %vm1228, %v1234, %v1212
    %v1247 = vsel %vm1229, %v1234, %v1213
    %v1248 = vsel %vm1230, %v1234, %v1214
    %v1249 = vsel %vm1231, %v1234, %v1215
    %v1250 = vsel %vm1232, %v1234, %v1216
    %vm1251 = vcmp.eq.s32.totalorder %v521, 21
    %vm1252 = vcmp.eq.s32.totalorder %v522, 21
    %vm1253 = vcmp.eq.s32.totalorder %v523, 21
    %vm1254 = vcmp.eq.s32.totalorder %v524, 21
    %vm1255 = vcmp.eq.s32.totalorder %v525, 21
    %vm1256 = vcmp.eq.s32.totalorder %v526, 21
    %vm1257 = vcmp.eq.s32.totalorder %v527, 21
    %vm1258 = vcmp.eq.s32.totalorder %v528, 21
    %vm1259 = vcmp.eq.s32.totalorder %v529, 21
    %vm1260 = vcmp.eq.s32.totalorder %v530, 21
    %vm1261 = vcmp.eq.s32.totalorder %v531, 21
    %vm1262 = vcmp.eq.s32.totalorder %v532, 21
    %vm1263 = vcmp.eq.s32.totalorder %v533, 21
    %vm1264 = vcmp.eq.s32.totalorder %v534, 21
    %vm1265 = vcmp.eq.s32.totalorder %v535, 21
    %vm1266 = vcmp.eq.s32.totalorder %v536, 21
    %s1267 = sld [smem:[#allocation2 + $0x15]]
    %v1268 = vstv %s1267
    %v1269 = vsel %vm1251, %v1268, %v1235
    %v1270 = vsel %vm1252, %v1268, %v1236
    %v1271 = vsel %vm1253, %v1268, %v1237
    %v1272 = vsel %vm1254, %v1268, %v1238
    %v1273 = vsel %vm1255, %v1268, %v1239
    %v1274 = vsel %vm1256, %v1268, %v1240
    %v1275 = vsel %vm1257, %v1268, %v1241
    %v1276 = vsel %vm1258, %v1268, %v1242
    %v1277 = vsel %vm1259, %v1268, %v1243
    %v1278 = vsel %vm1260, %v1268, %v1244
    %v1279 = vsel %vm1261, %v1268, %v1245
    %v1280 = vsel %vm1262, %v1268, %v1246
    %v1281 = vsel %vm1263, %v1268, %v1247
    %v1282 = vsel %vm1264, %v1268, %v1248
    %v1283 = vsel %vm1265, %v1268, %v1249
    %v1284 = vsel %vm1266, %v1268, %v1250
    %vm1285 = vcmp.eq.s32.totalorder %v521, 22
    %vm1286 = vcmp.eq.s32.totalorder %v522, 22
    %vm1287 = vcmp.eq.s32.totalorder %v523, 22
    %vm1288 = vcmp.eq.s32.totalorder %v524, 22
    %vm1289 = vcmp.eq.s32.totalorder %v525, 22
    %vm1290 = vcmp.eq.s32.totalorder %v526, 22
    %vm1291 = vcmp.eq.s32.totalorder %v527, 22
    %vm1292 = vcmp.eq.s32.totalorder %v528, 22
    %vm1293 = vcmp.eq.s32.totalorder %v529, 22
    %vm1294 = vcmp.eq.s32.totalorder %v530, 22
    %vm1295 = vcmp.eq.s32.totalorder %v531, 22
    %vm1296 = vcmp.eq.s32.totalorder %v532, 22
    %vm1297 = vcmp.eq.s32.totalorder %v533, 22
    %vm1298 = vcmp.eq.s32.totalorder %v534, 22
    %vm1299 = vcmp.eq.s32.totalorder %v535, 22
    %vm1300 = vcmp.eq.s32.totalorder %v536, 22
    %s1301 = sld [smem:[#allocation2 + $0x16]]
    %v1302 = vstv %s1301
    %v1303 = vsel %vm1285, %v1302, %v1269
    %v1304 = vsel %vm1286, %v1302, %v1270
    %v1305 = vsel %vm1287, %v1302, %v1271
    %v1306 = vsel %vm1288, %v1302, %v1272
    %v1307 = vsel %vm1289, %v1302, %v1273
    %v1308 = vsel %vm1290, %v1302, %v1274
    %v1309 = vsel %vm1291, %v1302, %v1275
    %v1310 = vsel %vm1292, %v1302, %v1276
    %v1311 = vsel %vm1293, %v1302, %v1277
    %v1312 = vsel %vm1294, %v1302, %v1278
    %v1313 = vsel %vm1295, %v1302, %v1279
    %v1314 = vsel %vm1296, %v1302, %v1280
    %v1315 = vsel %vm1297, %v1302, %v1281
    %v1316 = vsel %vm1298, %v1302, %v1282
    %v1317 = vsel %vm1299, %v1302, %v1283
    %v1318 = vsel %vm1300, %v1302, %v1284
    %vm1319 = vcmp.eq.s32.totalorder %v521, 23
    %vm1320 = vcmp.eq.s32.totalorder %v522, 23
    %vm1321 = vcmp.eq.s32.totalorder %v523, 23
    %vm1322 = vcmp.eq.s32.totalorder %v524, 23
    %vm1323 = vcmp.eq.s32.totalorder %v525, 23
    %vm1324 = vcmp.eq.s32.totalorder %v526, 23
    %vm1325 = vcmp.eq.s32.totalorder %v527, 23
    %vm1326 = vcmp.eq.s32.totalorder %v528, 23
    %vm1327 = vcmp.eq.s32.totalorder %v529, 23
    %vm1328 = vcmp.eq.s32.totalorder %v530, 23
    %vm1329 = vcmp.eq.s32.totalorder %v531, 23
    %vm1330 = vcmp.eq.s32.totalorder %v532, 23
    %vm1331 = vcmp.eq.s32.totalorder %v533, 23
    %vm1332 = vcmp.eq.s32.totalorder %v534, 23
    %vm1333 = vcmp.eq.s32.totalorder %v535, 23
    %vm1334 = vcmp.eq.s32.totalorder %v536, 23
    %s1335 = sld [smem:[#allocation2 + $0x17]]
    %v1336 = vstv %s1335
    %v1337 = vsel %vm1319, %v1336, %v1303
    %v1338 = vsel %vm1320, %v1336, %v1304
    %v1339 = vsel %vm1321, %v1336, %v1305
    %v1340 = vsel %vm1322, %v1336, %v1306
    %v1341 = vsel %vm1323, %v1336, %v1307
    %v1342 = vsel %vm1324, %v1336, %v1308
    %v1343 = vsel %vm1325, %v1336, %v1309
    %v1344 = vsel %vm1326, %v1336, %v1310
    %v1345 = vsel %vm1327, %v1336, %v1311
    %v1346 = vsel %vm1328, %v1336, %v1312
    %v1347 = vsel %vm1329, %v1336, %v1313
    %v1348 = vsel %vm1330, %v1336, %v1314
    %v1349 = vsel %vm1331, %v1336, %v1315
    %v1350 = vsel %vm1332, %v1336, %v1316
    %v1351 = vsel %vm1333, %v1336, %v1317
    %v1352 = vsel %vm1334, %v1336, %v1318
    %vm1353 = vcmp.eq.s32.totalorder %v521, 24
    %vm1354 = vcmp.eq.s32.totalorder %v522, 24
    %vm1355 = vcmp.eq.s32.totalorder %v523, 24
    %vm1356 = vcmp.eq.s32.totalorder %v524, 24
    %vm1357 = vcmp.eq.s32.totalorder %v525, 24
    %vm1358 = vcmp.eq.s32.totalorder %v526, 24
    %vm1359 = vcmp.eq.s32.totalorder %v527, 24
    %vm1360 = vcmp.eq.s32.totalorder %v528, 24
    %vm1361 = vcmp.eq.s32.totalorder %v529, 24
    %vm1362 = vcmp.eq.s32.totalorder %v530, 24
    %vm1363 = vcmp.eq.s32.totalorder %v531, 24
    %vm1364 = vcmp.eq.s32.totalorder %v532, 24
    %vm1365 = vcmp.eq.s32.totalorder %v533, 24
    %vm1366 = vcmp.eq.s32.totalorder %v534, 24
    %vm1367 = vcmp.eq.s32.totalorder %v535, 24
    %vm1368 = vcmp.eq.s32.totalorder %v536, 24
    %s1369 = sld [smem:[#allocation2 + $0x18]]
    %v1370 = vstv %s1369
    %v1371 = vsel %vm1353, %v1370, %v1337
    %v1372 = vsel %vm1354, %v1370, %v1338
    %v1373 = vsel %vm1355, %v1370, %v1339
    %v1374 = vsel %vm1356, %v1370, %v1340
    %v1375 = vsel %vm1357, %v1370, %v1341
    %v1376 = vsel %vm1358, %v1370, %v1342
    %v1377 = vsel %vm1359, %v1370, %v1343
    %v1378 = vsel %vm1360, %v1370, %v1344
    %v1379 = vsel %vm1361, %v1370, %v1345
    %v1380 = vsel %vm1362, %v1370, %v1346
    %v1381 = vsel %vm1363, %v1370, %v1347
    %v1382 = vsel %vm1364, %v1370, %v1348
    %v1383 = vsel %vm1365, %v1370, %v1349
    %v1384 = vsel %vm1366, %v1370, %v1350
    %v1385 = vsel %vm1367, %v1370, %v1351
    %v1386 = vsel %vm1368, %v1370, %v1352
    %vm1387 = vcmp.eq.s32.totalorder %v521, 25
    %vm1388 = vcmp.eq.s32.totalorder %v522, 25
    %vm1389 = vcmp.eq.s32.totalorder %v523, 25
    %vm1390 = vcmp.eq.s32.totalorder %v524, 25
    %vm1391 = vcmp.eq.s32.totalorder %v525, 25
    %vm1392 = vcmp.eq.s32.totalorder %v526, 25
    %vm1393 = vcmp.eq.s32.totalorder %v527, 25
    %vm1394 = vcmp.eq.s32.totalorder %v528, 25
    %vm1395 = vcmp.eq.s32.totalorder %v529, 25
    %vm1396 = vcmp.eq.s32.totalorder %v530, 25
    %vm1397 = vcmp.eq.s32.totalorder %v531, 25
    %vm1398 = vcmp.eq.s32.totalorder %v532, 25
    %vm1399 = vcmp.eq.s32.totalorder %v533, 25
    %vm1400 = vcmp.eq.s32.totalorder %v534, 25
    %vm1401 = vcmp.eq.s32.totalorder %v535, 25
    %vm1402 = vcmp.eq.s32.totalorder %v536, 25
    %s1403 = sld [smem:[#allocation2 + $0x19]]
    %v1404 = vstv %s1403
    %v1405 = vsel %vm1387, %v1404, %v1371
    %v1406 = vsel %vm1388, %v1404, %v1372
    %v1407 = vsel %vm1389, %v1404, %v1373
    %v1408 = vsel %vm1390, %v1404, %v1374
    %v1409 = vsel %vm1391, %v1404, %v1375
    %v1410 = vsel %vm1392, %v1404, %v1376
    %v1411 = vsel %vm1393, %v1404, %v1377
    %v1412 = vsel %vm1394, %v1404, %v1378
    %v1413 = vsel %vm1395, %v1404, %v1379
    %v1414 = vsel %vm1396, %v1404, %v1380
    %v1415 = vsel %vm1397, %v1404, %v1381
    %v1416 = vsel %vm1398, %v1404, %v1382
    %v1417 = vsel %vm1399, %v1404, %v1383
    %v1418 = vsel %vm1400, %v1404, %v1384
    %v1419 = vsel %vm1401, %v1404, %v1385
    %v1420 = vsel %vm1402, %v1404, %v1386
    %vm1421 = vcmp.eq.s32.totalorder %v521, 26
    %vm1422 = vcmp.eq.s32.totalorder %v522, 26
    %vm1423 = vcmp.eq.s32.totalorder %v523, 26
    %vm1424 = vcmp.eq.s32.totalorder %v524, 26
    %vm1425 = vcmp.eq.s32.totalorder %v525, 26
    %vm1426 = vcmp.eq.s32.totalorder %v526, 26
    %vm1427 = vcmp.eq.s32.totalorder %v527, 26
    %vm1428 = vcmp.eq.s32.totalorder %v528, 26
    %vm1429 = vcmp.eq.s32.totalorder %v529, 26
    %vm1430 = vcmp.eq.s32.totalorder %v530, 26
    %vm1431 = vcmp.eq.s32.totalorder %v531, 26
    %vm1432 = vcmp.eq.s32.totalorder %v532, 26
    %vm1433 = vcmp.eq.s32.totalorder %v533, 26
    %vm1434 = vcmp.eq.s32.totalorder %v534, 26
    %vm1435 = vcmp.eq.s32.totalorder %v535, 26
    %vm1436 = vcmp.eq.s32.totalorder %v536, 26
    %s1437 = sld [smem:[#allocation2 + $0x1a]]
    %v1438 = vstv %s1437
    %v1439 = vsel %vm1421, %v1438, %v1405
    %v1440 = vsel %vm1422, %v1438, %v1406
    %v1441 = vsel %vm1423, %v1438, %v1407
    %v1442 = vsel %vm1424, %v1438, %v1408
    %v1443 = vsel %vm1425, %v1438, %v1409
    %v1444 = vsel %vm1426, %v1438, %v1410
    %v1445 = vsel %vm1427, %v1438, %v1411
    %v1446 = vsel %vm1428, %v1438, %v1412
    %v1447 = vsel %vm1429, %v1438, %v1413
    %v1448 = vsel %vm1430, %v1438, %v1414
    %v1449 = vsel %vm1431, %v1438, %v1415
    %v1450 = vsel %vm1432, %v1438, %v1416
    %v1451 = vsel %vm1433, %v1438, %v1417
    %v1452 = vsel %vm1434, %v1438, %v1418
    %v1453 = vsel %vm1435, %v1438, %v1419
    %v1454 = vsel %vm1436, %v1438, %v1420
    %vm1455 = vcmp.eq.s32.totalorder %v521, 27
    %vm1456 = vcmp.eq.s32.totalorder %v522, 27
    %vm1457 = vcmp.eq.s32.totalorder %v523, 27
    %vm1458 = vcmp.eq.s32.totalorder %v524, 27
    %vm1459 = vcmp.eq.s32.totalorder %v525, 27
    %vm1460 = vcmp.eq.s32.totalorder %v526, 27
    %vm1461 = vcmp.eq.s32.totalorder %v527, 27
    %vm1462 = vcmp.eq.s32.totalorder %v528, 27
    %vm1463 = vcmp.eq.s32.totalorder %v529, 27
    %vm1464 = vcmp.eq.s32.totalorder %v530, 27
    %vm1465 = vcmp.eq.s32.totalorder %v531, 27
    %vm1466 = vcmp.eq.s32.totalorder %v532, 27
    %vm1467 = vcmp.eq.s32.totalorder %v533, 27
    %vm1468 = vcmp.eq.s32.totalorder %v534, 27
    %vm1469 = vcmp.eq.s32.totalorder %v535, 27
    %vm1470 = vcmp.eq.s32.totalorder %v536, 27
    %s1471 = sld [smem:[#allocation2 + $0x1b]]
    %v1472 = vstv %s1471
    %v1473 = vsel %vm1455, %v1472, %v1439
    %v1474 = vsel %vm1456, %v1472, %v1440
    %v1475 = vsel %vm1457, %v1472, %v1441
    %v1476 = vsel %vm1458, %v1472, %v1442
    %v1477 = vsel %vm1459, %v1472, %v1443
    %v1478 = vsel %vm1460, %v1472, %v1444
    %v1479 = vsel %vm1461, %v1472, %v1445
    %v1480 = vsel %vm1462, %v1472, %v1446
    %v1481 = vsel %vm1463, %v1472, %v1447
    %v1482 = vsel %vm1464, %v1472, %v1448
    %v1483 = vsel %vm1465, %v1472, %v1449
    %v1484 = vsel %vm1466, %v1472, %v1450
    %v1485 = vsel %vm1467, %v1472, %v1451
    %v1486 = vsel %vm1468, %v1472, %v1452
    %v1487 = vsel %vm1469, %v1472, %v1453
    %v1488 = vsel %vm1470, %v1472, %v1454
    %vm1489 = vcmp.eq.s32.totalorder %v521, 28
    %vm1490 = vcmp.eq.s32.totalorder %v522, 28
    %vm1491 = vcmp.eq.s32.totalorder %v523, 28
    %vm1492 = vcmp.eq.s32.totalorder %v524, 28
    %vm1493 = vcmp.eq.s32.totalorder %v525, 28
    %vm1494 = vcmp.eq.s32.totalorder %v526, 28
    %vm1495 = vcmp.eq.s32.totalorder %v527, 28
    %vm1496 = vcmp.eq.s32.totalorder %v528, 28
    %vm1497 = vcmp.eq.s32.totalorder %v529, 28
    %vm1498 = vcmp.eq.s32.totalorder %v530, 28
    %vm1499 = vcmp.eq.s32.totalorder %v531, 28
    %vm1500 = vcmp.eq.s32.totalorder %v532, 28
    %vm1501 = vcmp.eq.s32.totalorder %v533, 28
    %vm1502 = vcmp.eq.s32.totalorder %v534, 28
    %vm1503 = vcmp.eq.s32.totalorder %v535, 28
    %vm1504 = vcmp.eq.s32.totalorder %v536, 28
    %s1505 = sld [smem:[#allocation2 + $0x1c]]
    %v1506 = vstv %s1505
    %v1507 = vsel %vm1489, %v1506, %v1473
    %v1508 = vsel %vm1490, %v1506, %v1474
    %v1509 = vsel %vm1491, %v1506, %v1475
    %v1510 = vsel %vm1492, %v1506, %v1476
    %v1511 = vsel %vm1493, %v1506, %v1477
    %v1512 = vsel %vm1494, %v1506, %v1478
    %v1513 = vsel %vm1495, %v1506, %v1479
    %v1514 = vsel %vm1496, %v1506, %v1480
    %v1515 = vsel %vm1497, %v1506, %v1481
    %v1516 = vsel %vm1498, %v1506, %v1482
    %v1517 = vsel %vm1499, %v1506, %v1483
    %v1518 = vsel %vm1500, %v1506, %v1484
    %v1519 = vsel %vm1501, %v1506, %v1485
    %v1520 = vsel %vm1502, %v1506, %v1486
    %v1521 = vsel %vm1503, %v1506, %v1487
    %v1522 = vsel %vm1504, %v1506, %v1488
    %vm1523 = vcmp.eq.s32.totalorder %v521, 29
    %vm1524 = vcmp.eq.s32.totalorder %v522, 29
    %vm1525 = vcmp.eq.s32.totalorder %v523, 29
    %vm1526 = vcmp.eq.s32.totalorder %v524, 29
    %vm1527 = vcmp.eq.s32.totalorder %v525, 29
    %vm1528 = vcmp.eq.s32.totalorder %v526, 29
    %vm1529 = vcmp.eq.s32.totalorder %v527, 29
    %vm1530 = vcmp.eq.s32.totalorder %v528, 29
    %vm1531 = vcmp.eq.s32.totalorder %v529, 29
    %vm1532 = vcmp.eq.s32.totalorder %v530, 29
    %vm1533 = vcmp.eq.s32.totalorder %v531, 29
    %vm1534 = vcmp.eq.s32.totalorder %v532, 29
    %vm1535 = vcmp.eq.s32.totalorder %v533, 29
    %vm1536 = vcmp.eq.s32.totalorder %v534, 29
    %vm1537 = vcmp.eq.s32.totalorder %v535, 29
    %vm1538 = vcmp.eq.s32.totalorder %v536, 29
    %s1539 = sld [smem:[#allocation2 + $0x1d]]
    %v1540 = vstv %s1539
    %v1541 = vsel %vm1523, %v1540, %v1507
    %v1542 = vsel %vm1524, %v1540, %v1508
    %v1543 = vsel %vm1525, %v1540, %v1509
    %v1544 = vsel %vm1526, %v1540, %v1510
    %v1545 = vsel %vm1527, %v1540, %v1511
    %v1546 = vsel %vm1528, %v1540, %v1512
    %v1547 = vsel %vm1529, %v1540, %v1513
    %v1548 = vsel %vm1530, %v1540, %v1514
    %v1549 = vsel %vm1531, %v1540, %v1515
    %v1550 = vsel %vm1532, %v1540, %v1516
    %v1551 = vsel %vm1533, %v1540, %v1517
    %v1552 = vsel %vm1534, %v1540, %v1518
    %v1553 = vsel %vm1535, %v1540, %v1519
    %v1554 = vsel %vm1536, %v1540, %v1520
    %v1555 = vsel %vm1537, %v1540, %v1521
    %v1556 = vsel %vm1538, %v1540, %v1522
    %vm1557 = vcmp.eq.s32.totalorder %v521, 30
    %vm1558 = vcmp.eq.s32.totalorder %v522, 30
    %vm1559 = vcmp.eq.s32.totalorder %v523, 30
    %vm1560 = vcmp.eq.s32.totalorder %v524, 30
    %vm1561 = vcmp.eq.s32.totalorder %v525, 30
    %vm1562 = vcmp.eq.s32.totalorder %v526, 30
    %vm1563 = vcmp.eq.s32.totalorder %v527, 30
    %vm1564 = vcmp.eq.s32.totalorder %v528, 30
    %vm1565 = vcmp.eq.s32.totalorder %v529, 30
    %vm1566 = vcmp.eq.s32.totalorder %v530, 30
    %vm1567 = vcmp.eq.s32.totalorder %v531, 30
    %vm1568 = vcmp.eq.s32.totalorder %v532, 30
    %vm1569 = vcmp.eq.s32.totalorder %v533, 30
    %vm1570 = vcmp.eq.s32.totalorder %v534, 30
    %vm1571 = vcmp.eq.s32.totalorder %v535, 30
    %vm1572 = vcmp.eq.s32.totalorder %v536, 30
    %s1573 = sld [smem:[#allocation2 + $0x1e]]
    %v1574 = vstv %s1573
    %v1575 = vsel %vm1557, %v1574, %v1541
    %v1576 = vsel %vm1558, %v1574, %v1542
    %v1577 = vsel %vm1559, %v1574, %v1543
    %v1578 = vsel %vm1560, %v1574, %v1544
    %v1579 = vsel %vm1561, %v1574, %v1545
    %v1580 = vsel %vm1562, %v1574, %v1546
    %v1581 = vsel %vm1563, %v1574, %v1547
    %v1582 = vsel %vm1564, %v1574, %v1548
    %v1583 = vsel %vm1565, %v1574, %v1549
    %v1584 = vsel %vm1566, %v1574, %v1550
    %v1585 = vsel %vm1567, %v1574, %v1551
    %v1586 = vsel %vm1568, %v1574, %v1552
    %v1587 = vsel %vm1569, %v1574, %v1553
    %v1588 = vsel %vm1570, %v1574, %v1554
    %v1589 = vsel %vm1571, %v1574, %v1555
    %v1590 = vsel %vm1572, %v1574, %v1556
    %vm1591 = vcmp.eq.s32.totalorder %v521, 31
    %vm1592 = vcmp.eq.s32.totalorder %v522, 31
    %vm1593 = vcmp.eq.s32.totalorder %v523, 31
    %vm1594 = vcmp.eq.s32.totalorder %v524, 31
    %vm1595 = vcmp.eq.s32.totalorder %v525, 31
    %vm1596 = vcmp.eq.s32.totalorder %v526, 31
    %vm1597 = vcmp.eq.s32.totalorder %v527, 31
    %vm1598 = vcmp.eq.s32.totalorder %v528, 31
    %vm1599 = vcmp.eq.s32.totalorder %v529, 31
    %vm1600 = vcmp.eq.s32.totalorder %v530, 31
    %vm1601 = vcmp.eq.s32.totalorder %v531, 31
    %vm1602 = vcmp.eq.s32.totalorder %v532, 31
    %vm1603 = vcmp.eq.s32.totalorder %v533, 31
    %vm1604 = vcmp.eq.s32.totalorder %v534, 31
    %vm1605 = vcmp.eq.s32.totalorder %v535, 31
    %vm1606 = vcmp.eq.s32.totalorder %v536, 31
    %s1607 = sld [smem:[#allocation2 + $0x1f]]
    %v1608 = vstv %s1607
    %v1609 = vsel %vm1591, %v1608, %v1575
    %v1610 = vsel %vm1592, %v1608, %v1576
    %v1611 = vsel %vm1593, %v1608, %v1577
    %v1612 = vsel %vm1594, %v1608, %v1578
    %v1613 = vsel %vm1595, %v1608, %v1579
    %v1614 = vsel %vm1596, %v1608, %v1580
    %v1615 = vsel %vm1597, %v1608, %v1581
    %v1616 = vsel %vm1598, %v1608, %v1582
    %v1617 = vsel %vm1599, %v1608, %v1583
    %v1618 = vsel %vm1600, %v1608, %v1584
    %v1619 = vsel %vm1601, %v1608, %v1585
    %v1620 = vsel %vm1602, %v1608, %v1586
    %v1621 = vsel %vm1603, %v1608, %v1587
    %v1622 = vsel %vm1604, %v1608, %v1588
    %v1623 = vsel %vm1605, %v1608, %v1589
    %v1624 = vsel %vm1606, %v1608, %v1590
    %1625 = vst [vmem:[#allocation5] sm:$0xff] %v1609
    %1626 = vst [vmem:[#allocation5 + $0x8] sm:$0xff] %v1610
    %1627 = vst [vmem:[#allocation5 + $0x10] sm:$0xff] %v1611
    %1628 = vst [vmem:[#allocation5 + $0x18] sm:$0xff] %v1612
    %1629 = vst [vmem:[#allocation5 + $0x20] sm:$0xff] %v1613
    %1630 = vst [vmem:[#allocation5 + $0x28] sm:$0xff] %v1614
    %1631 = vst [vmem:[#allocation5 + $0x30] sm:$0xff] %v1615
    %1632 = vst [vmem:[#allocation5 + $0x38] sm:$0xff] %v1616
    %1633 = vst [vmem:[#allocation5 + $0x40] sm:$0xff] %v1617
    %1634 = vst [vmem:[#allocation5 + $0x48] sm:$0xff] %v1618
    %1635 = vst [vmem:[#allocation5 + $0x50] sm:$0xff] %v1619
    %1636 = vst [vmem:[#allocation5 + $0x58] sm:$0xff] %v1620
    %1637 = vst [vmem:[#allocation5 + $0x60] sm:$0xff] %v1621
    %1638 = vst [vmem:[#allocation5 + $0x68] sm:$0xff] %v1622
    %1639 = vst [vmem:[#allocation5 + $0x70] sm:$0xff] %v1623
    %1640 = vst [vmem:[#allocation5 + $0x78] sm:$0xff] %v1624
    // Predicated region
    $region10: #{tpu_custom_call.1} parent=1 // pred_check
      _
    $region11: #{tpu_custom_call.1} parent=1 // pred_check_branch
      %1642 = sbr.rel (0) target = $region13
    $region12: #{tpu_custom_call.1} parent=1 // pred_region
      %s1644 = ssub.s32 2048, 2048
      %1645 = vsyncadd [#allocation3], %s1644
      %s1646 = sshll.u32 [#allocation5], 4
      %s1647 = int_to_ptr.vmem [resolvable:$true] %s1646
      %1652 = dma.vmem_to_hbm [thread:$0]  %s1647, 2048, %s1, [#allocation3], 128, 128, 8
    $region13: #{tpu_custom_call.1} parent=1 // pred_fallthru
      _
    // Predicated region
    $region14: #{tpu_custom_call.1} parent=1 // pred_check
      _
    $region15: #{tpu_custom_call.1} parent=1 // pred_check_branch
      %1654 = sbr.rel (0) target = $region17
    $region16: #{tpu_custom_call.1} parent=1 // pred_region
      %1655 = dma.done [#allocation3], 2048
    $region17: #{tpu_custom_call.1} parent=1 // pred_fallthru
      _
    %1656 = vsyncpa [#allocation3], 1
    %1657 = vsyncpa [#allocation4], 1

</llo_original>
